<compile_context>
chip_gen: v7x
topology: tpu7x:2x2x1
jax: 0.10.0
libtpu: 0.0.40
codegen_flags: <defaults>
</compile_context>

<pallas_src>
import functools

import jax
import jax.numpy as jnp
from jax import lax
from jax.experimental import pallas as pl
from jax.experimental.pallas import tpu as pltpu


def portfolio_rnn_kernel(x_ref, wih_ref, whh_ref, b_ref, wf_ref, bf_ref,
                         out_ref, *, trade_limit):
    T, Bp = x_ref.shape
    H = whh_ref.shape[0]

    wih = wih_ref[...]      # (1, H)
    whh = whh_ref[...]      # (H, H)
    b = b_ref[...]          # (1, H)

    # Hoisted input projection: one vectorized op for all T steps.
    #   xw[t] = x_t * W_ih^T + (b_ih + b_hh)        shape (T, Bp, H)
    xw = x_ref[...][:, :, None] * wih[None, :, :] + b[None, :, :]

    # Elman RNN recurrence (tanh nonlinearity, PyTorch default):
    #   h_t = tanh(xw[t] + h_{t-1} @ W_hh^T)
    # T is static -> full unroll with static slices of xw; only the small
    # (Bp,H)x(H,H) MXU matmul + tanh remain on the serial critical path.
    # TODO(synk): optionally keep W_hh weight-stationary via pltpu.matmul_push_rhs
    # / matmul_acc_lhs to avoid re-pushing the RHS each step.
    h = jnp.zeros((Bp, H), jnp.float32)
    for t in range(T):
        h = jnp.tanh(xw[t] + jnp.dot(h, whh, preferred_element_type=jnp.float32))

    # Fused heads: one MXU matmul, one lane-dense (Bp, Lp) store.
    out = jnp.dot(h, wf_ref[...], preferred_element_type=jnp.float32) + bf_ref[...]
    lane = lax.broadcasted_iota(jnp.int32, out.shape, 1)
    lim = float(trade_limit)
    out_ref[...] = jnp.where(lane == 0,
                             jnp.maximum(out, 0.0),          # premium: ReLU (lane 0)
                             jnp.clip(out, -lim, lim))       # trade:   clamp (lanes 1..T-1)


def portfolio_rnn_forward(x, params, trade_limit):
    """x: (B, T, 1) float32 (PyTorch batch_first layout)."""
    B, T, _ = x.shape
    H = params["whh_t"].shape[0]

    # Padding: batch -> multiple of 8 sublanes, fused head width -> multiple of 128 lanes.
    Bp = ((B + 7) // 8) * 8
    L = 1 + (T - 1)                         # fused head width (premium | trade)
    Lp = ((L + 127) // 128) * 128

    x_tm = jnp.transpose(x[..., 0], (1, 0)).astype(jnp.float32)   # (T, B)
    x_tm = jnp.pad(x_tm, ((0, 0), (0, Bp - B)))                   # (T, Bp)

    # Fused + lane-padded head weights (zero padding leaves results unchanged).
    wf = jnp.concatenate([params["wp_t"], params["wt_t"]], axis=1)   # (H, L)
    bf = jnp.concatenate([params["bp"], params["bt"]], axis=1)       # (1, L)
    wf = jnp.pad(wf, ((0, 0), (0, Lp - L)))                          # (H, Lp)
    bf = jnp.pad(bf, ((0, 0), (0, Lp - L)))                          # (1, Lp)

    kernel = functools.partial(portfolio_rnn_kernel, trade_limit=trade_limit)
    vmem = pl.BlockSpec(memory_space=pltpu.MemorySpace.VMEM)

    out = pl.pallas_call(
        kernel,
        out_shape=jax.ShapeDtypeStruct((Bp, Lp), jnp.float32),
        in_specs=[vmem] * 6,
        out_specs=vmem,
    )(x_tm,
      params["wih_t"], params["whh_t"], params["b_rnn"],
      wf, bf)

    premium = out[:B, 0:1]          # (B, 1)
    trade = out[:B, 1:T]            # (B, T-1)
    return premium, trade


def init_params(key, hidden_size, total_days):
    """Deterministic synthetic parameters (PyTorch-style uniform init)."""
    H, T = hidden_size, total_days
    ks = jax.random.split(key, 8)
    s_rnn = 1.0 / jnp.sqrt(H)
    s_lin = 1.0 / jnp.sqrt(H)
    u = lambda k, shape, s: jax.random.uniform(k, shape, jnp.float32, -s, s)
    return {
        "wih_t": u(ks[0], (1, H), s_rnn),          # W_ih (H,1) transposed
        "whh_t": u(ks[1], (H, H), s_rnn),          # W_hh (H,H) transposed
        "b_rnn": u(ks[2], (1, H), s_rnn) + u(ks[3], (1, H), s_rnn),   # b_ih + b_hh
        "wp_t":  u(ks[4], (H, 1), s_lin),          # premium weight (1,H) transposed
        "bp":    u(ks[5], (1, 1), s_lin),
        "wt_t":  u(ks[6], (H, T - 1), s_lin),      # trade weight (T-1,H) transposed
        "bt":    u(ks[7], (1, T - 1), s_lin),
    }


def reference_forward(x, params, trade_limit):
    """Pure-JAX reference of the PyTorch forward (for correctness check)."""
    B = x.shape[0]
    H = params["whh_t"].shape[0]
    xs = jnp.transpose(x[..., 0], (1, 0))          # (T, B)

    def step(h, xt):
        pre = xt[:, None] * params["wih_t"] + h @ params["whh_t"] + params["b_rnn"]
        return jnp.tanh(pre), None

    h_last, _ = lax.scan(step, jnp.zeros((B, H), jnp.float32), xs)
    prem = jnp.maximum(h_last @ params["wp_t"] + params["bp"], 0.0)
    trade = jnp.clip(h_last @ params["wt_t"] + params["bt"],
                     -float(trade_limit), float(trade_limit))
    return prem, trade


if __name__ == "__main__":
    # Small, module-consistent shapes: batch=2, seq (total days)=16, hidden=32.
    B, T, H = 2, 16, 32
    trade_limit = 10

    key = jax.random.PRNGKey(0)
    k_x, k_p = jax.random.split(key)
    x = jax.random.uniform(k_x, (B, T, 1), jnp.float32, 0.5, 1.5)   # price-like series
    params = init_params(k_p, H, T)

    prem, trade = portfolio_rnn_forward(x, params, trade_limit)
    jax.block_until_ready((prem, trade))

    prem_ref, trade_ref = reference_forward(x, params, trade_limit)
    assert prem.shape == (B, 1) and trade.shape == (B, T - 1)
    assert jnp.allclose(prem, prem_ref, atol=1e-5, rtol=1e-5)
    assert jnp.allclose(trade, trade_ref, atol=1e-5, rtol=1e-5)

    print("KERNEL_OK")
</pallas_src>

<mosaic_0001>
module attributes {stable_mosaic.version = 11 : i64} {
  func.func @portfolio_rnn_kernel(%arg0: memref<16x8xf32, #tpu.memory_space<vmem>>, %arg1: memref<1x32xf32, #tpu.memory_space<vmem>>, %arg2: memref<32x32xf32, #tpu.memory_space<vmem>>, %arg3: memref<1x32xf32, #tpu.memory_space<vmem>>, %arg4: memref<32x128xf32, #tpu.memory_space<vmem>>, %arg5: memref<1x128xf32, #tpu.memory_space<vmem>>, %arg6: memref<8x128xf32, #tpu.memory_space<vmem>>) attributes {dimension_semantics = [], scalar_prefetch = 0 : i64, scratch_operands = 0 : i64, tpu.core_type = #tpu.core_type<tc>} {
    %c0 = arith.constant 0 : index
    %c0_0 = arith.constant 0 : index
    %0 = vector.load %arg1[%c0, %c0_0] : memref<1x32xf32, #tpu.memory_space<vmem>>, vector<1x32xf32>
    %c0_1 = arith.constant 0 : index
    %c0_2 = arith.constant 0 : index
    %1 = vector.load %arg2[%c0_1, %c0_2] : memref<32x32xf32, #tpu.memory_space<vmem>>, vector<32x32xf32>
    %c0_3 = arith.constant 0 : index
    %c0_4 = arith.constant 0 : index
    %2 = vector.load %arg3[%c0_3, %c0_4] : memref<1x32xf32, #tpu.memory_space<vmem>>, vector<1x32xf32>
    %c0_5 = arith.constant 0 : index
    %c0_6 = arith.constant 0 : index
    %3 = vector.load %arg0[%c0_5, %c0_6] : memref<16x8xf32, #tpu.memory_space<vmem>>, vector<16x8xf32>
    %4 = vector.shape_cast %3 : vector<16x8xf32> to vector<16x8x1xf32>
    %5 = vector.shape_cast %0 : vector<1x32xf32> to vector<1x1x32xf32>
    %6 = vector.broadcast %4 : vector<16x8x1xf32> to vector<16x8x32xf32>
    %7 = vector.broadcast %5 : vector<1x1x32xf32> to vector<16x8x32xf32>
    %8 = arith.mulf %6, %7 : vector<16x8x32xf32>
    %9 = vector.shape_cast %2 : vector<1x32xf32> to vector<1x1x32xf32>
    %10 = vector.broadcast %9 : vector<1x1x32xf32> to vector<16x8x32xf32>
    %11 = arith.addf %8, %10 : vector<16x8x32xf32>
    %cst = arith.constant 0.000000e+00 : f32
    %12 = vector.broadcast %cst : f32 to vector<8x32xf32>
    %13 = vector.extract_strided_slice %11 {offsets = [0, 0, 0], sizes = [1, 8, 32], strides = [1, 1, 1]} : vector<16x8x32xf32> to vector<1x8x32xf32>
    %14 = vector.shape_cast %13 : vector<1x8x32xf32> to vector<8x32xf32>
    %cst_7 = arith.constant dense<0.000000e+00> : vector<8x32xf32>
    %15 = tpu.matmul %12, %1, %cst_7 {dimension_numbers = #tpu.dot_dimension_numbers<[1], [0], [0], [1], [0, 0, 1, 1], [], []>} : vector<8x32xf32>, vector<32x32xf32>, vector<8x32xf32> -> vector<8x32xf32>
    %16 = arith.addf %14, %15 : vector<8x32xf32>
    %17 = math.tanh %16 : vector<8x32xf32>
    %18 = vector.extract_strided_slice %11 {offsets = [1, 0, 0], sizes = [1, 8, 32], strides = [1, 1, 1]} : vector<16x8x32xf32> to vector<1x8x32xf32>
    %19 = vector.shape_cast %18 : vector<1x8x32xf32> to vector<8x32xf32>
    %cst_8 = arith.constant dense<0.000000e+00> : vector<8x32xf32>
    %20 = tpu.matmul %17, %1, %cst_8 {dimension_numbers = #tpu.dot_dimension_numbers<[1], [0], [0], [1], [0, 0, 1, 1], [], []>} : vector<8x32xf32>, vector<32x32xf32>, vector<8x32xf32> -> vector<8x32xf32>
    %21 = arith.addf %19, %20 : vector<8x32xf32>
    %22 = math.tanh %21 : vector<8x32xf32>
    %23 = vector.extract_strided_slice %11 {offsets = [2, 0, 0], sizes = [1, 8, 32], strides = [1, 1, 1]} : vector<16x8x32xf32> to vector<1x8x32xf32>
    %24 = vector.shape_cast %23 : vector<1x8x32xf32> to vector<8x32xf32>
    %cst_9 = arith.constant dense<0.000000e+00> : vector<8x32xf32>
    %25 = tpu.matmul %22, %1, %cst_9 {dimension_numbers = #tpu.dot_dimension_numbers<[1], [0], [0], [1], [0, 0, 1, 1], [], []>} : vector<8x32xf32>, vector<32x32xf32>, vector<8x32xf32> -> vector<8x32xf32>
    %26 = arith.addf %24, %25 : vector<8x32xf32>
    %27 = math.tanh %26 : vector<8x32xf32>
    %28 = vector.extract_strided_slice %11 {offsets = [3, 0, 0], sizes = [1, 8, 32], strides = [1, 1, 1]} : vector<16x8x32xf32> to vector<1x8x32xf32>
    %29 = vector.shape_cast %28 : vector<1x8x32xf32> to vector<8x32xf32>
    %cst_10 = arith.constant dense<0.000000e+00> : vector<8x32xf32>
    %30 = tpu.matmul %27, %1, %cst_10 {dimension_numbers = #tpu.dot_dimension_numbers<[1], [0], [0], [1], [0, 0, 1, 1], [], []>} : vector<8x32xf32>, vector<32x32xf32>, vector<8x32xf32> -> vector<8x32xf32>
    %31 = arith.addf %29, %30 : vector<8x32xf32>
    %32 = math.tanh %31 : vector<8x32xf32>
    %33 = vector.extract_strided_slice %11 {offsets = [4, 0, 0], sizes = [1, 8, 32], strides = [1, 1, 1]} : vector<16x8x32xf32> to vector<1x8x32xf32>
    %34 = vector.shape_cast %33 : vector<1x8x32xf32> to vector<8x32xf32>
    %cst_11 = arith.constant dense<0.000000e+00> : vector<8x32xf32>
    %35 = tpu.matmul %32, %1, %cst_11 {dimension_numbers = #tpu.dot_dimension_numbers<[1], [0], [0], [1], [0, 0, 1, 1], [], []>} : vector<8x32xf32>, vector<32x32xf32>, vector<8x32xf32> -> vector<8x32xf32>
    %36 = arith.addf %34, %35 : vector<8x32xf32>
    %37 = math.tanh %36 : vector<8x32xf32>
    %38 = vector.extract_strided_slice %11 {offsets = [5, 0, 0], sizes = [1, 8, 32], strides = [1, 1, 1]} : vector<16x8x32xf32> to vector<1x8x32xf32>
    %39 = vector.shape_cast %38 : vector<1x8x32xf32> to vector<8x32xf32>
    %cst_12 = arith.constant dense<0.000000e+00> : vector<8x32xf32>
    %40 = tpu.matmul %37, %1, %cst_12 {dimension_numbers = #tpu.dot_dimension_numbers<[1], [0], [0], [1], [0, 0, 1, 1], [], []>} : vector<8x32xf32>, vector<32x32xf32>, vector<8x32xf32> -> vector<8x32xf32>
    %41 = arith.addf %39, %40 : vector<8x32xf32>
    %42 = math.tanh %41 : vector<8x32xf32>
    %43 = vector.extract_strided_slice %11 {offsets = [6, 0, 0], sizes = [1, 8, 32], strides = [1, 1, 1]} : vector<16x8x32xf32> to vector<1x8x32xf32>
    %44 = vector.shape_cast %43 : vector<1x8x32xf32> to vector<8x32xf32>
    %cst_13 = arith.constant dense<0.000000e+00> : vector<8x32xf32>
    %45 = tpu.matmul %42, %1, %cst_13 {dimension_numbers = #tpu.dot_dimension_numbers<[1], [0], [0], [1], [0, 0, 1, 1], [], []>} : vector<8x32xf32>, vector<32x32xf32>, vector<8x32xf32> -> vector<8x32xf32>
    %46 = arith.addf %44, %45 : vector<8x32xf32>
    %47 = math.tanh %46 : vector<8x32xf32>
    %48 = vector.extract_strided_slice %11 {offsets = [7, 0, 0], sizes = [1, 8, 32], strides = [1, 1, 1]} : vector<16x8x32xf32> to vector<1x8x32xf32>
    %49 = vector.shape_cast %48 : vector<1x8x32xf32> to vector<8x32xf32>
    %cst_14 = arith.constant dense<0.000000e+00> : vector<8x32xf32>
    %50 = tpu.matmul %47, %1, %cst_14 {dimension_numbers = #tpu.dot_dimension_numbers<[1], [0], [0], [1], [0, 0, 1, 1], [], []>} : vector<8x32xf32>, vector<32x32xf32>, vector<8x32xf32> -> vector<8x32xf32>
    %51 = arith.addf %49, %50 : vector<8x32xf32>
    %52 = math.tanh %51 : vector<8x32xf32>
    %53 = vector.extract_strided_slice %11 {offsets = [8, 0, 0], sizes = [1, 8, 32], strides = [1, 1, 1]} : vector<16x8x32xf32> to vector<1x8x32xf32>
    %54 = vector.shape_cast %53 : vector<1x8x32xf32> to vector<8x32xf32>
    %cst_15 = arith.constant dense<0.000000e+00> : vector<8x32xf32>
    %55 = tpu.matmul %52, %1, %cst_15 {dimension_numbers = #tpu.dot_dimension_numbers<[1], [0], [0], [1], [0, 0, 1, 1], [], []>} : vector<8x32xf32>, vector<32x32xf32>, vector<8x32xf32> -> vector<8x32xf32>
    %56 = arith.addf %54, %55 : vector<8x32xf32>
    %57 = math.tanh %56 : vector<8x32xf32>
    %58 = vector.extract_strided_slice %11 {offsets = [9, 0, 0], sizes = [1, 8, 32], strides = [1, 1, 1]} : vector<16x8x32xf32> to vector<1x8x32xf32>
    %59 = vector.shape_cast %58 : vector<1x8x32xf32> to vector<8x32xf32>
    %cst_16 = arith.constant dense<0.000000e+00> : vector<8x32xf32>
    %60 = tpu.matmul %57, %1, %cst_16 {dimension_numbers = #tpu.dot_dimension_numbers<[1], [0], [0], [1], [0, 0, 1, 1], [], []>} : vector<8x32xf32>, vector<32x32xf32>, vector<8x32xf32> -> vector<8x32xf32>
    %61 = arith.addf %59, %60 : vector<8x32xf32>
    %62 = math.tanh %61 : vector<8x32xf32>
    %63 = vector.extract_strided_slice %11 {offsets = [10, 0, 0], sizes = [1, 8, 32], strides = [1, 1, 1]} : vector<16x8x32xf32> to vector<1x8x32xf32>
    %64 = vector.shape_cast %63 : vector<1x8x32xf32> to vector<8x32xf32>
    %cst_17 = arith.constant dense<0.000000e+00> : vector<8x32xf32>
    %65 = tpu.matmul %62, %1, %cst_17 {dimension_numbers = #tpu.dot_dimension_numbers<[1], [0], [0], [1], [0, 0, 1, 1], [], []>} : vector<8x32xf32>, vector<32x32xf32>, vector<8x32xf32> -> vector<8x32xf32>
    %66 = arith.addf %64, %65 : vector<8x32xf32>
    %67 = math.tanh %66 : vector<8x32xf32>
    %68 = vector.extract_strided_slice %11 {offsets = [11, 0, 0], sizes = [1, 8, 32], strides = [1, 1, 1]} : vector<16x8x32xf32> to vector<1x8x32xf32>
    %69 = vector.shape_cast %68 : vector<1x8x32xf32> to vector<8x32xf32>
    %cst_18 = arith.constant dense<0.000000e+00> : vector<8x32xf32>
    %70 = tpu.matmul %67, %1, %cst_18 {dimension_numbers = #tpu.dot_dimension_numbers<[1], [0], [0], [1], [0, 0, 1, 1], [], []>} : vector<8x32xf32>, vector<32x32xf32>, vector<8x32xf32> -> vector<8x32xf32>
    %71 = arith.addf %69, %70 : vector<8x32xf32>
    %72 = math.tanh %71 : vector<8x32xf32>
    %73 = vector.extract_strided_slice %11 {offsets = [12, 0, 0], sizes = [1, 8, 32], strides = [1, 1, 1]} : vector<16x8x32xf32> to vector<1x8x32xf32>
    %74 = vector.shape_cast %73 : vector<1x8x32xf32> to vector<8x32xf32>
    %cst_19 = arith.constant dense<0.000000e+00> : vector<8x32xf32>
    %75 = tpu.matmul %72, %1, %cst_19 {dimension_numbers = #tpu.dot_dimension_numbers<[1], [0], [0], [1], [0, 0, 1, 1], [], []>} : vector<8x32xf32>, vector<32x32xf32>, vector<8x32xf32> -> vector<8x32xf32>
    %76 = arith.addf %74, %75 : vector<8x32xf32>
    %77 = math.tanh %76 : vector<8x32xf32>
    %78 = vector.extract_strided_slice %11 {offsets = [13, 0, 0], sizes = [1, 8, 32], strides = [1, 1, 1]} : vector<16x8x32xf32> to vector<1x8x32xf32>
    %79 = vector.shape_cast %78 : vector<1x8x32xf32> to vector<8x32xf32>
    %cst_20 = arith.constant dense<0.000000e+00> : vector<8x32xf32>
    %80 = tpu.matmul %77, %1, %cst_20 {dimension_numbers = #tpu.dot_dimension_numbers<[1], [0], [0], [1], [0, 0, 1, 1], [], []>} : vector<8x32xf32>, vector<32x32xf32>, vector<8x32xf32> -> vector<8x32xf32>
    %81 = arith.addf %79, %80 : vector<8x32xf32>
    %82 = math.tanh %81 : vector<8x32xf32>
    %83 = vector.extract_strided_slice %11 {offsets = [14, 0, 0], sizes = [1, 8, 32], strides = [1, 1, 1]} : vector<16x8x32xf32> to vector<1x8x32xf32>
    %84 = vector.shape_cast %83 : vector<1x8x32xf32> to vector<8x32xf32>
    %cst_21 = arith.constant dense<0.000000e+00> : vector<8x32xf32>
    %85 = tpu.matmul %82, %1, %cst_21 {dimension_numbers = #tpu.dot_dimension_numbers<[1], [0], [0], [1], [0, 0, 1, 1], [], []>} : vector<8x32xf32>, vector<32x32xf32>, vector<8x32xf32> -> vector<8x32xf32>
    %86 = arith.addf %84, %85 : vector<8x32xf32>
    %87 = math.tanh %86 : vector<8x32xf32>
    %88 = vector.extract_strided_slice %11 {offsets = [15, 0, 0], sizes = [1, 8, 32], strides = [1, 1, 1]} : vector<16x8x32xf32> to vector<1x8x32xf32>
    %89 = vector.shape_cast %88 : vector<1x8x32xf32> to vector<8x32xf32>
    %cst_22 = arith.constant dense<0.000000e+00> : vector<8x32xf32>
    %90 = tpu.matmul %87, %1, %cst_22 {dimension_numbers = #tpu.dot_dimension_numbers<[1], [0], [0], [1], [0, 0, 1, 1], [], []>} : vector<8x32xf32>, vector<32x32xf32>, vector<8x32xf32> -> vector<8x32xf32>
    %91 = arith.addf %89, %90 : vector<8x32xf32>
    %92 = math.tanh %91 : vector<8x32xf32>
    %c0_23 = arith.constant 0 : index
    %c0_24 = arith.constant 0 : index
    %93 = vector.load %arg4[%c0_23, %c0_24] : memref<32x128xf32, #tpu.memory_space<vmem>>, vector<32x128xf32>
    %cst_25 = arith.constant dense<0.000000e+00> : vector<8x128xf32>
    %94 = tpu.matmul %92, %93, %cst_25 {dimension_numbers = #tpu.dot_dimension_numbers<[1], [0], [0], [1], [0, 0, 1, 1], [], []>} : vector<8x32xf32>, vector<32x128xf32>, vector<8x128xf32> -> vector<8x128xf32>
    %c0_26 = arith.constant 0 : index
    %c0_27 = arith.constant 0 : index
    %95 = vector.load %arg5[%c0_26, %c0_27] : memref<1x128xf32, #tpu.memory_space<vmem>>, vector<1x128xf32>
    %96 = vector.broadcast %95 : vector<1x128xf32> to vector<8x128xf32>
    %97 = arith.addf %94, %96 : vector<8x128xf32>
    %98 = tpu.iota {dimensions = array<i32: 1>} : vector<8x128xi32>
    %c0_i32 = arith.constant 0 : i32
    %99 = vector.broadcast %c0_i32 : i32 to vector<8x128xi32>
    %100 = arith.cmpi eq, %98, %99 : vector<8x128xi32>
    %cst_28 = arith.constant 0.000000e+00 : f32
    %101 = vector.broadcast %cst_28 : f32 to vector<8x128xf32>
    %102 = arith.maximumf %97, %101 : vector<8x128xf32>
    %cst_29 = arith.constant -1.000000e+01 : f32
    %cst_30 = arith.constant 1.000000e+01 : f32
    %103 = vector.broadcast %cst_29 : f32 to vector<8x128xf32>
    %104 = arith.maximumf %103, %97 : vector<8x128xf32>
    %105 = vector.broadcast %cst_30 : f32 to vector<8x128xf32>
    %106 = arith.minimumf %105, %104 : vector<8x128xf32>
    %107 = arith.select %100, %102, %106 : vector<8x128xi1>, vector<8x128xf32>
    %c0_31 = arith.constant 0 : index
    %c0_32 = arith.constant 0 : index
    %108 = vector.load %arg6[%c0_31, %c0_32] : memref<8x128xf32, #tpu.memory_space<vmem>>, vector<8x128xf32>
    tpu.vector_store %arg6[%c0_31, %c0_32], %107 {strides = array<i32>} : memref<8x128xf32, #tpu.memory_space<vmem>>, vector<8x128xf32>,
    return
  }
}

</mosaic_0001>

<llo_original>
// kernel: tpu_custom_call.1
$region0: #{tpu_custom_call.1}
  #allocation0 [shape = 'u32[]', space=smem, size = 0x4, offset = 0x4, fixed_abs, tag = 'smem constant byte address 0x4 - core index']
  #allocation1 [shape = 'u32[144,128]{1,0:T(1,128)}', space=vmem, size = 0x12000, scoped, tag = 'internal scratch']
  %s0 = inlined_call_operand.vmem [shape: f32[16,8], index: 0, kind: input, shape index: {}]
  %s1 = inlined_call_operand.vmem [shape: f32[1,32], index: 1, kind: input, shape index: {}]
  %s2 = inlined_call_operand.hbm [shape: f32[32,32], index: 2, kind: input, shape index: {}]
  %s3 = inlined_call_operand.vmem [shape: f32[1,32], index: 3, kind: input, shape index: {}]
  %s4 = inlined_call_operand.vmem [shape: f32[32,128], index: 4, kind: input, shape index: {}]
  %s5 = inlined_call_operand.vmem [shape: f32[1,128], index: 5, kind: input, shape index: {}]
  %s6 = inlined_call_operand.hbm [shape: f32[8,128], index: 6, kind: output, shape index: {}]
  %s7 = sld [smem:[#allocation0]]
  $region38: #{tpu_custom_call.1} parent=0
    _
  %s9 = ssub.s32 1, %s7
  %s10 = scalar_select 0, %s9, %s7
  $region1: #{tpu_custom_call.1} parent=0
    #allocation2 [shape = 'u8[16384]{0}', space=vmem, size = 0x4000, scoped, tag = 'input window, operand 2, single buffered']
    #allocation3 [shape = 's32[1]{0}', space=sflag, size = 0x4, scoped, tag = 'scoped memory for tpu_custom_call.1']
    #allocation4 [shape = 's32[1]{0}', space=sflag, size = 0x4, scoped, tag = 'scoped memory for tpu_custom_call.1']
    #allocation5 [shape = 'u8[4096]{0}', space=vmem, size = 0x1000, scoped, tag = 'output window, operand 0, single buffered']
    %11 = vsyncpa [#allocation3], 0
    %12 = vsyncpa [#allocation4], 0
    // Predicated region
    $region2: #{tpu_custom_call.1} parent=1 // pred_check
      _
    $region3: #{tpu_custom_call.1} parent=1 // pred_check_branch
      %14 = sbr.rel (0) target = $region5
    $region4: #{tpu_custom_call.1} parent=1 // pred_region
      _
    $region5: #{tpu_custom_call.1} parent=1 // pred_fallthru
      _
    // Predicated region
    $region6: #{tpu_custom_call.1} parent=1 // pred_check
      _
    $region7: #{tpu_custom_call.1} parent=1 // pred_check_branch
      %16 = sbr.rel (0) target = $region9
    $region8: #{tpu_custom_call.1} parent=1 // pred_region
      _
    $region9: #{tpu_custom_call.1} parent=1 // pred_fallthru
      _
    // Predicated region
    $region10: #{tpu_custom_call.1} parent=1 // pred_check
      _
    $region11: #{tpu_custom_call.1} parent=1 // pred_check_branch
      %18 = sbr.rel (0) target = $region13
    $region12: #{tpu_custom_call.1} parent=1 // pred_region
      %s20 = ssub.s32 512, 512
      %21 = vsyncadd [#allocation3], %s20
      %s22 = sshll.u32 [#allocation2], 4
      %s23 = int_to_ptr.vmem [resolvable:$true] %s22
      %28 = dma.hbm_to_vmem [thread:$0]  %s2, 512, %s23, [#allocation3], 128, 128, 8
    $region13: #{tpu_custom_call.1} parent=1 // pred_fallthru
      _
    // Predicated region
    $region14: #{tpu_custom_call.1} parent=1 // pred_check
      _
    $region15: #{tpu_custom_call.1} parent=1 // pred_check_branch
      %30 = sbr.rel (0) target = $region17
    $region16: #{tpu_custom_call.1} parent=1 // pred_region
      _
    $region17: #{tpu_custom_call.1} parent=1 // pred_fallthru
      _
    // Predicated region
    $region18: #{tpu_custom_call.1} parent=1 // pred_check
      _
    $region19: #{tpu_custom_call.1} parent=1 // pred_check_branch
      %32 = sbr.rel (0) target = $region21
    $region20: #{tpu_custom_call.1} parent=1 // pred_region
      _
    $region21: #{tpu_custom_call.1} parent=1 // pred_fallthru
      _
    // Predicated region
    $region22: #{tpu_custom_call.1} parent=1 // pred_check
      _
    $region23: #{tpu_custom_call.1} parent=1 // pred_check_branch
      %34 = sbr.rel (0) target = $region25
    $region24: #{tpu_custom_call.1} parent=1 // pred_region
      _
    $region25: #{tpu_custom_call.1} parent=1 // pred_fallthru
      _
    // Predicated region
    $region26: #{tpu_custom_call.1} parent=1 // pred_check
      _
    $region27: #{tpu_custom_call.1} parent=1 // pred_check_branch
      %36 = sbr.rel (0) target = $region29
    $region28: #{tpu_custom_call.1} parent=1 // pred_region
      %37 = dma.done [#allocation3], 512
    $region29: #{tpu_custom_call.1} parent=1 // pred_fallthru
      _
    %v38 = vld [vmem:[%s1] sm:$0x1]
    %v39 = vld [vmem:[#allocation2] sm:$0xff]
    %v40 = vld [vmem:[#allocation2 + $0x8] sm:$0xff]
    %v41 = vld [vmem:[#allocation2 + $0x10] sm:$0xff]
    %v42 = vld [vmem:[#allocation2 + $0x18] sm:$0xff]
    %v43 = vld [vmem:[%s3] sm:$0x1]
    %v44 = vld [vmem:[%s0] sm:$0xff]
    %v45 = vld [vmem:[%s0 + $0x8] sm:$0xff]
    %v46 = vlaneseq
    %v47 = vshrl.u32 %v46, 7
    %v48 = vsub.s32 0, %v47
    %v49 = vrot.slane %v44, %v48
    %51 = vbcast.lane.b32.xlu0 %v49, 256
    %v52 = vpop.permute.xlu0 %51
    %v53 = vlaneseq
    %v54 = vshrl.u32 %v53, 7
    %v55 = vsub.s32 1, %v54
    %v56 = vrot.slane %v44, %v55
    %58 = vbcast.lane.b32.xlu0 %v56, 256
    %v59 = vpop.permute.xlu0 %58
    %v60 = vlaneseq
    %v61 = vshrl.u32 %v60, 7
    %v62 = vsub.s32 2, %v61
    %v63 = vrot.slane %v44, %v62
    %65 = vbcast.lane.b32.xlu0 %v63, 256
    %v66 = vpop.permute.xlu0 %65
    %v67 = vlaneseq
    %v68 = vshrl.u32 %v67, 7
    %v69 = vsub.s32 3, %v68
    %v70 = vrot.slane %v44, %v69
    %72 = vbcast.lane.b32.xlu0 %v70, 256
    %v73 = vpop.permute.xlu0 %72
    %v74 = vlaneseq
    %v75 = vshrl.u32 %v74, 7
    %v76 = vsub.s32 4, %v75
    %v77 = vrot.slane %v44, %v76
    %79 = vbcast.lane.b32.xlu0 %v77, 256
    %v80 = vpop.permute.xlu0 %79
    %v81 = vlaneseq
    %v82 = vshrl.u32 %v81, 7
    %v83 = vsub.s32 5, %v82
    %v84 = vrot.slane %v44, %v83
    %86 = vbcast.lane.b32.xlu0 %v84, 256
    %v87 = vpop.permute.xlu0 %86
    %v88 = vlaneseq
    %v89 = vshrl.u32 %v88, 7
    %v90 = vsub.s32 6, %v89
    %v91 = vrot.slane %v44, %v90
    %93 = vbcast.lane.b32.xlu0 %v91, 256
    %v94 = vpop.permute.xlu0 %93
    %v95 = vlaneseq
    %v96 = vshrl.u32 %v95, 7
    %v97 = vsub.s32 7, %v96
    %v98 = vrot.slane %v44, %v97
    %100 = vbcast.lane.b32.xlu0 %v98, 256
    %v101 = vpop.permute.xlu0 %100
    %v102 = vlaneseq
    %v103 = vshrl.u32 %v102, 7
    %v104 = vsub.s32 0, %v103
    %v105 = vrot.slane %v45, %v104
    %107 = vbcast.lane.b32.xlu0 %v105, 256
    %v108 = vpop.permute.xlu0 %107
    %v109 = vlaneseq
    %v110 = vshrl.u32 %v109, 7
    %v111 = vsub.s32 1, %v110
    %v112 = vrot.slane %v45, %v111
    %114 = vbcast.lane.b32.xlu0 %v112, 256
    %v115 = vpop.permute.xlu0 %114
    %v116 = vlaneseq
    %v117 = vshrl.u32 %v116, 7
    %v118 = vsub.s32 2, %v117
    %v119 = vrot.slane %v45, %v118
    %121 = vbcast.lane.b32.xlu0 %v119, 256
    %v122 = vpop.permute.xlu0 %121
    %v123 = vlaneseq
    %v124 = vshrl.u32 %v123, 7
    %v125 = vsub.s32 3, %v124
    %v126 = vrot.slane %v45, %v125
    %128 = vbcast.lane.b32.xlu0 %v126, 256
    %v129 = vpop.permute.xlu0 %128
    %v130 = vlaneseq
    %v131 = vshrl.u32 %v130, 7
    %v132 = vsub.s32 4, %v131
    %v133 = vrot.slane %v45, %v132
    %135 = vbcast.lane.b32.xlu0 %v133, 256
    %v136 = vpop.permute.xlu0 %135
    %v137 = vlaneseq
    %v138 = vshrl.u32 %v137, 7
    %v139 = vsub.s32 5, %v138
    %v140 = vrot.slane %v45, %v139
    %142 = vbcast.lane.b32.xlu0 %v140, 256
    %v143 = vpop.permute.xlu0 %142
    %v144 = vlaneseq
    %v145 = vshrl.u32 %v144, 7
    %v146 = vsub.s32 6, %v145
    %v147 = vrot.slane %v45, %v146
    %149 = vbcast.lane.b32.xlu0 %v147, 256
    %v150 = vpop.permute.xlu0 %149
    %v151 = vlaneseq
    %v152 = vshrl.u32 %v151, 7
    %v153 = vsub.s32 7, %v152
    %v154 = vrot.slane %v45, %v153
    %156 = vbcast.lane.b32.xlu0 %v154, 256
    %v157 = vpop.permute.xlu0 %156
    %v159 = vlaneseq
    %v160 = vshrl.u32 %v159, 7
    %v161 = vsub.s32 0, %v160
    %v162 = vrot.slane %v38, %v161
    %v164 = vmul.f32 %v52, %v162
    %v165 = vmul.f32 %v59, %v162
    %v166 = vmul.f32 %v66, %v162
    %v167 = vmul.f32 %v73, %v162
    %v168 = vmul.f32 %v80, %v162
    %v169 = vmul.f32 %v87, %v162
    %v170 = vmul.f32 %v94, %v162
    %v171 = vmul.f32 %v101, %v162
    %v172 = vmul.f32 %v108, %v162
    %v173 = vmul.f32 %v115, %v162
    %v174 = vmul.f32 %v122, %v162
    %v175 = vmul.f32 %v129, %v162
    %v176 = vmul.f32 %v136, %v162
    %v177 = vmul.f32 %v143, %v162
    %v178 = vmul.f32 %v150, %v162
    %v179 = vmul.f32 %v157, %v162
    %v181 = vlaneseq
    %v182 = vshrl.u32 %v181, 7
    %v183 = vsub.s32 0, %v182
    %v184 = vrot.slane %v43, %v183
    %v186 = vadd.f32 %v164, %v184
    %v187 = vadd.f32 %v165, %v184
    %v188 = vadd.f32 %v166, %v184
    %v189 = vadd.f32 %v167, %v184
    %v190 = vadd.f32 %v168, %v184
    %v191 = vadd.f32 %v169, %v184
    %v192 = vadd.f32 %v170, %v184
    %v193 = vadd.f32 %v171, %v184
    %v194 = vadd.f32 %v172, %v184
    %v195 = vadd.f32 %v173, %v184
    %v196 = vadd.f32 %v174, %v184
    %v197 = vadd.f32 %v175, %v184
    %v198 = vadd.f32 %v176, %v184
    %v199 = vadd.f32 %v177, %v184
    %v200 = vadd.f32 %v178, %v184
    %v201 = vadd.f32 %v179, %v184
    %vm202 = vcmask 261120
    %v204 = vsel %vm202, 0.0, 0
    %206 = vmatprep.subr.mxu0 0.0
    %207 = vmatpush1.msra.mxu0 %v39
    %208 = vmatprep.subr.mxu0 0.0
    %209 = vmatpush1.msra.mxu0 %v40
    %210 = vmatprep.subr.mxu0 0.0
    %211 = vmatpush1.msra.mxu0 %v41
    %212 = vmatprep.subr.mxu0 0.0
    %213 = vmatpush1.msra.mxu0 %v42
    %214 = vmatprep.subr.mxu0 0.0
    %215 = vmatpush1.msra.mxu0 0.0
    %216 = vmatprep.subr.mxu0 0.0
    %217 = vmatpush1.msra.mxu0 0.0
    %218 = vmatprep.subr.mxu0 0.0
    %219 = vmatpush1.msra.mxu0 0.0
    %220 = vmatprep.subr.mxu0 0.0
    %221 = vmatpush1.msra.mxu0 0.0
    %222 = vmatprep.subr.mxu0 0.0
    %223 = vmatpush1.msra.mxu0 0.0
    %224 = vmatprep.subr.mxu0 0.0
    %225 = vmatpush1.msra.mxu0 0.0
    %226 = vmatprep.subr.mxu0 0.0
    %227 = vmatpush1.msra.mxu0 0.0
    %228 = vmatprep.subr.mxu0 0.0
    %229 = vmatpush1.msra.mxu0 0.0
    %230 = vmatprep.subr.mxu0 0.0
    %231 = vmatpush1.msra.mxu0 0.0
    %232 = vmatprep.subr.mxu0 0.0
    %233 = vmatpush1.msra.mxu0 0.0
    %234 = vmatprep.subr.mxu0 0.0
    %235 = vmatpush1.msra.mxu0 0.0
    %236 = vmatprep.subr.mxu0 0.0
    %237 = vmatpush1.msra.mxu0 0.0
    %238 = vmatprep.subr.mxu0 0.0
    %239 = vmatpush1.msra.mxu0 0.0
    %240 = vmatprep.subr.mxu0 0.0
    %241 = vmatpush1.msra.mxu0 0.0
    %242 = vmatprep.subr.mxu0 0.0
    %243 = vmatpush1.msra.mxu0 0.0
    %244 = vmatprep.subr.mxu0 0.0
    %245 = vmatpush1.msra.mxu0 0.0
    %246 = vmatprep.subr.mxu0 0.0
    %247 = vmatpush1.msra.mxu0 0.0
    %248 = vmatprep.subr.mxu0 0.0
    %249 = vmatpush1.msra.mxu0 0.0
    %250 = vmatprep.subr.mxu0 0.0
    %251 = vmatpush1.msra.mxu0 0.0
    %252 = vmatprep.subr.mxu0 0.0
    %253 = vmatpush1.msra.mxu0 0.0
    %254 = vmatprep.subr.mxu0 0.0
    %255 = vmatpush1.msra.mxu0 0.0
    %256 = vmatprep.subr.mxu0 0.0
    %257 = vmatpush1.msra.mxu0 0.0
    %258 = vmatprep.subr.mxu0 0.0
    %259 = vmatpush1.msra.mxu0 0.0
    %260 = vmatprep.subr.mxu0 0.0
    %261 = vmatpush1.msra.mxu0 0.0
    %262 = vmatprep.subr.mxu0 0.0
    %263 = vmatpush1.msra.mxu0 0.0
    %264 = vmatprep.subr.mxu0 0.0
    %265 = vmatpush1.msra.mxu0 0.0
    %266 = vmatprep.subr.mxu0 0.0
    %267 = vmatpush1.msra.mxu0 0.0
    %268 = vmatprep.subr.mxu0 0.0
    %269 = vmatpush1.msra.mxu0 0.0
    %270 = vmatprep.mubr.f32.mxu0 0.0
    %271 = vmatmul.mubr.f32.gmra.mrb[0].mxu0 %v204
    %v272 = vpop.f32.mrb[0].mxu0
    %v273 = vadd.f32 0.0, %v272
    %v274 = vpop.f32.mrb[0].mxu0
    %275 = vdwg.mxu0
    %v276 = vadd.f32 %v186, %v273
    %v277 = vtanh.pop %v276
    %v279 = vsel %vm202, %v277, 0
    %281 = vmatprep.subr.mxu0 0.0
    %282 = vmatpush1.msra.mxu0 %v39
    %283 = vmatprep.subr.mxu0 0.0
    %284 = vmatpush1.msra.mxu0 %v40
    %285 = vmatprep.subr.mxu0 0.0
    %286 = vmatpush1.msra.mxu0 %v41
    %287 = vmatprep.subr.mxu0 0.0
    %288 = vmatpush1.msra.mxu0 %v42
    %289 = vmatprep.subr.mxu0 0.0
    %290 = vmatpush1.msra.mxu0 0.0
    %291 = vmatprep.subr.mxu0 0.0
    %292 = vmatpush1.msra.mxu0 0.0
    %293 = vmatprep.subr.mxu0 0.0
    %294 = vmatpush1.msra.mxu0 0.0
    %295 = vmatprep.subr.mxu0 0.0
    %296 = vmatpush1.msra.mxu0 0.0
    %297 = vmatprep.subr.mxu0 0.0
    %298 = vmatpush1.msra.mxu0 0.0
    %299 = vmatprep.subr.mxu0 0.0
    %300 = vmatpush1.msra.mxu0 0.0
    %301 = vmatprep.subr.mxu0 0.0
    %302 = vmatpush1.msra.mxu0 0.0
    %303 = vmatprep.subr.mxu0 0.0
    %304 = vmatpush1.msra.mxu0 0.0
    %305 = vmatprep.subr.mxu0 0.0
    %306 = vmatpush1.msra.mxu0 0.0
    %307 = vmatprep.subr.mxu0 0.0
    %308 = vmatpush1.msra.mxu0 0.0
    %309 = vmatprep.subr.mxu0 0.0
    %310 = vmatpush1.msra.mxu0 0.0
    %311 = vmatprep.subr.mxu0 0.0
    %312 = vmatpush1.msra.mxu0 0.0
    %313 = vmatprep.subr.mxu0 0.0
    %314 = vmatpush1.msra.mxu0 0.0
    %315 = vmatprep.subr.mxu0 0.0
    %316 = vmatpush1.msra.mxu0 0.0
    %317 = vmatprep.subr.mxu0 0.0
    %318 = vmatpush1.msra.mxu0 0.0
    %319 = vmatprep.subr.mxu0 0.0
    %320 = vmatpush1.msra.mxu0 0.0
    %321 = vmatprep.subr.mxu0 0.0
    %322 = vmatpush1.msra.mxu0 0.0
    %323 = vmatprep.subr.mxu0 0.0
    %324 = vmatpush1.msra.mxu0 0.0
    %325 = vmatprep.subr.mxu0 0.0
    %326 = vmatpush1.msra.mxu0 0.0
    %327 = vmatprep.subr.mxu0 0.0
    %328 = vmatpush1.msra.mxu0 0.0
    %329 = vmatprep.subr.mxu0 0.0
    %330 = vmatpush1.msra.mxu0 0.0
    %331 = vmatprep.subr.mxu0 0.0
    %332 = vmatpush1.msra.mxu0 0.0
    %333 = vmatprep.subr.mxu0 0.0
    %334 = vmatpush1.msra.mxu0 0.0
    %335 = vmatprep.subr.mxu0 0.0
    %336 = vmatpush1.msra.mxu0 0.0
    %337 = vmatprep.subr.mxu0 0.0
    %338 = vmatpush1.msra.mxu0 0.0
    %339 = vmatprep.subr.mxu0 0.0
    %340 = vmatpush1.msra.mxu0 0.0
    %341 = vmatprep.subr.mxu0 0.0
    %342 = vmatpush1.msra.mxu0 0.0
    %343 = vmatprep.subr.mxu0 0.0
    %344 = vmatpush1.msra.mxu0 0.0
    %345 = vmatprep.mubr.f32.mxu0 0.0
    %346 = vmatmul.mubr.f32.gmra.mrb[0].mxu0 %v279
    %v347 = vpop.f32.mrb[0].mxu0
    %v348 = vadd.f32 0.0, %v347
    %v349 = vpop.f32.mrb[0].mxu0
    %350 = vdwg.mxu0
    %v351 = vadd.f32 %v187, %v348
    %v352 = vtanh.pop %v351
    %v354 = vsel %vm202, %v352, 0
    %356 = vmatprep.subr.mxu0 0.0
    %357 = vmatpush1.msra.mxu0 %v39
    %358 = vmatprep.subr.mxu0 0.0
    %359 = vmatpush1.msra.mxu0 %v40
    %360 = vmatprep.subr.mxu0 0.0
    %361 = vmatpush1.msra.mxu0 %v41
    %362 = vmatprep.subr.mxu0 0.0
    %363 = vmatpush1.msra.mxu0 %v42
    %364 = vmatprep.subr.mxu0 0.0
    %365 = vmatpush1.msra.mxu0 0.0
    %366 = vmatprep.subr.mxu0 0.0
    %367 = vmatpush1.msra.mxu0 0.0
    %368 = vmatprep.subr.mxu0 0.0
    %369 = vmatpush1.msra.mxu0 0.0
    %370 = vmatprep.subr.mxu0 0.0
    %371 = vmatpush1.msra.mxu0 0.0
    %372 = vmatprep.subr.mxu0 0.0
    %373 = vmatpush1.msra.mxu0 0.0
    %374 = vmatprep.subr.mxu0 0.0
    %375 = vmatpush1.msra.mxu0 0.0
    %376 = vmatprep.subr.mxu0 0.0
    %377 = vmatpush1.msra.mxu0 0.0
    %378 = vmatprep.subr.mxu0 0.0
    %379 = vmatpush1.msra.mxu0 0.0
    %380 = vmatprep.subr.mxu0 0.0
    %381 = vmatpush1.msra.mxu0 0.0
    %382 = vmatprep.subr.mxu0 0.0
    %383 = vmatpush1.msra.mxu0 0.0
    %384 = vmatprep.subr.mxu0 0.0
    %385 = vmatpush1.msra.mxu0 0.0
    %386 = vmatprep.subr.mxu0 0.0
    %387 = vmatpush1.msra.mxu0 0.0
    %388 = vmatprep.subr.mxu0 0.0
    %389 = vmatpush1.msra.mxu0 0.0
    %390 = vmatprep.subr.mxu0 0.0
    %391 = vmatpush1.msra.mxu0 0.0
    %392 = vmatprep.subr.mxu0 0.0
    %393 = vmatpush1.msra.mxu0 0.0
    %394 = vmatprep.subr.mxu0 0.0
    %395 = vmatpush1.msra.mxu0 0.0
    %396 = vmatprep.subr.mxu0 0.0
    %397 = vmatpush1.msra.mxu0 0.0
    %398 = vmatprep.subr.mxu0 0.0
    %399 = vmatpush1.msra.mxu0 0.0
    %400 = vmatprep.subr.mxu0 0.0
    %401 = vmatpush1.msra.mxu0 0.0
    %402 = vmatprep.subr.mxu0 0.0
    %403 = vmatpush1.msra.mxu0 0.0
    %404 = vmatprep.subr.mxu0 0.0
    %405 = vmatpush1.msra.mxu0 0.0
    %406 = vmatprep.subr.mxu0 0.0
    %407 = vmatpush1.msra.mxu0 0.0
    %408 = vmatprep.subr.mxu0 0.0
    %409 = vmatpush1.msra.mxu0 0.0
    %410 = vmatprep.subr.mxu0 0.0
    %411 = vmatpush1.msra.mxu0 0.0
    %412 = vmatprep.subr.mxu0 0.0
    %413 = vmatpush1.msra.mxu0 0.0
    %414 = vmatprep.subr.mxu0 0.0
    %415 = vmatpush1.msra.mxu0 0.0
    %416 = vmatprep.subr.mxu0 0.0
    %417 = vmatpush1.msra.mxu0 0.0
    %418 = vmatprep.subr.mxu0 0.0
    %419 = vmatpush1.msra.mxu0 0.0
    %420 = vmatprep.mubr.f32.mxu0 0.0
    %421 = vmatmul.mubr.f32.gmra.mrb[0].mxu0 %v354
    %v422 = vpop.f32.mrb[0].mxu0
    %v423 = vadd.f32 0.0, %v422
    %v424 = vpop.f32.mrb[0].mxu0
    %425 = vdwg.mxu0
    %v426 = vadd.f32 %v188, %v423
    %v427 = vtanh.pop %v426
    %v429 = vsel %vm202, %v427, 0
    %431 = vmatprep.subr.mxu0 0.0
    %432 = vmatpush1.msra.mxu0 %v39
    %433 = vmatprep.subr.mxu0 0.0
    %434 = vmatpush1.msra.mxu0 %v40
    %435 = vmatprep.subr.mxu0 0.0
    %436 = vmatpush1.msra.mxu0 %v41
    %437 = vmatprep.subr.mxu0 0.0
    %438 = vmatpush1.msra.mxu0 %v42
    %439 = vmatprep.subr.mxu0 0.0
    %440 = vmatpush1.msra.mxu0 0.0
    %441 = vmatprep.subr.mxu0 0.0
    %442 = vmatpush1.msra.mxu0 0.0
    %443 = vmatprep.subr.mxu0 0.0
    %444 = vmatpush1.msra.mxu0 0.0
    %445 = vmatprep.subr.mxu0 0.0
    %446 = vmatpush1.msra.mxu0 0.0
    %447 = vmatprep.subr.mxu0 0.0
    %448 = vmatpush1.msra.mxu0 0.0
    %449 = vmatprep.subr.mxu0 0.0
    %450 = vmatpush1.msra.mxu0 0.0
    %451 = vmatprep.subr.mxu0 0.0
    %452 = vmatpush1.msra.mxu0 0.0
    %453 = vmatprep.subr.mxu0 0.0
    %454 = vmatpush1.msra.mxu0 0.0
    %455 = vmatprep.subr.mxu0 0.0
    %456 = vmatpush1.msra.mxu0 0.0
    %457 = vmatprep.subr.mxu0 0.0
    %458 = vmatpush1.msra.mxu0 0.0
    %459 = vmatprep.subr.mxu0 0.0
    %460 = vmatpush1.msra.mxu0 0.0
    %461 = vmatprep.subr.mxu0 0.0
    %462 = vmatpush1.msra.mxu0 0.0
    %463 = vmatprep.subr.mxu0 0.0
    %464 = vmatpush1.msra.mxu0 0.0
    %465 = vmatprep.subr.mxu0 0.0
    %466 = vmatpush1.msra.mxu0 0.0
    %467 = vmatprep.subr.mxu0 0.0
    %468 = vmatpush1.msra.mxu0 0.0
    %469 = vmatprep.subr.mxu0 0.0
    %470 = vmatpush1.msra.mxu0 0.0
    %471 = vmatprep.subr.mxu0 0.0
    %472 = vmatpush1.msra.mxu0 0.0
    %473 = vmatprep.subr.mxu0 0.0
    %474 = vmatpush1.msra.mxu0 0.0
    %475 = vmatprep.subr.mxu0 0.0
    %476 = vmatpush1.msra.mxu0 0.0
    %477 = vmatprep.subr.mxu0 0.0
    %478 = vmatpush1.msra.mxu0 0.0
    %479 = vmatprep.subr.mxu0 0.0
    %480 = vmatpush1.msra.mxu0 0.0
    %481 = vmatprep.subr.mxu0 0.0
    %482 = vmatpush1.msra.mxu0 0.0
    %483 = vmatprep.subr.mxu0 0.0
    %484 = vmatpush1.msra.mxu0 0.0
    %485 = vmatprep.subr.mxu0 0.0
    %486 = vmatpush1.msra.mxu0 0.0
    %487 = vmatprep.subr.mxu0 0.0
    %488 = vmatpush1.msra.mxu0 0.0
    %489 = vmatprep.subr.mxu0 0.0
    %490 = vmatpush1.msra.mxu0 0.0
    %491 = vmatprep.subr.mxu0 0.0
    %492 = vmatpush1.msra.mxu0 0.0
    %493 = vmatprep.subr.mxu0 0.0
    %494 = vmatpush1.msra.mxu0 0.0
    %495 = vmatprep.mubr.f32.mxu0 0.0
    %496 = vmatmul.mubr.f32.gmra.mrb[0].mxu0 %v429
    %v497 = vpop.f32.mrb[0].mxu0
    %v498 = vadd.f32 0.0, %v497
    %v499 = vpop.f32.mrb[0].mxu0
    %500 = vdwg.mxu0
    %v501 = vadd.f32 %v189, %v498
    %v502 = vtanh.pop %v501
    %v504 = vsel %vm202, %v502, 0
    %506 = vmatprep.subr.mxu0 0.0
    %507 = vmatpush1.msra.mxu0 %v39
    %508 = vmatprep.subr.mxu0 0.0
    %509 = vmatpush1.msra.mxu0 %v40
    %510 = vmatprep.subr.mxu0 0.0
    %511 = vmatpush1.msra.mxu0 %v41
    %512 = vmatprep.subr.mxu0 0.0
    %513 = vmatpush1.msra.mxu0 %v42
    %514 = vmatprep.subr.mxu0 0.0
    %515 = vmatpush1.msra.mxu0 0.0
    %516 = vmatprep.subr.mxu0 0.0
    %517 = vmatpush1.msra.mxu0 0.0
    %518 = vmatprep.subr.mxu0 0.0
    %519 = vmatpush1.msra.mxu0 0.0
    %520 = vmatprep.subr.mxu0 0.0
    %521 = vmatpush1.msra.mxu0 0.0
    %522 = vmatprep.subr.mxu0 0.0
    %523 = vmatpush1.msra.mxu0 0.0
    %524 = vmatprep.subr.mxu0 0.0
    %525 = vmatpush1.msra.mxu0 0.0
    %526 = vmatprep.subr.mxu0 0.0
    %527 = vmatpush1.msra.mxu0 0.0
    %528 = vmatprep.subr.mxu0 0.0
    %529 = vmatpush1.msra.mxu0 0.0
    %530 = vmatprep.subr.mxu0 0.0
    %531 = vmatpush1.msra.mxu0 0.0
    %532 = vmatprep.subr.mxu0 0.0
    %533 = vmatpush1.msra.mxu0 0.0
    %534 = vmatprep.subr.mxu0 0.0
    %535 = vmatpush1.msra.mxu0 0.0
    %536 = vmatprep.subr.mxu0 0.0
    %537 = vmatpush1.msra.mxu0 0.0
    %538 = vmatprep.subr.mxu0 0.0
    %539 = vmatpush1.msra.mxu0 0.0
    %540 = vmatprep.subr.mxu0 0.0
    %541 = vmatpush1.msra.mxu0 0.0
    %542 = vmatprep.subr.mxu0 0.0
    %543 = vmatpush1.msra.mxu0 0.0
    %544 = vmatprep.subr.mxu0 0.0
    %545 = vmatpush1.msra.mxu0 0.0
    %546 = vmatprep.subr.mxu0 0.0
    %547 = vmatpush1.msra.mxu0 0.0
    %548 = vmatprep.subr.mxu0 0.0
    %549 = vmatpush1.msra.mxu0 0.0
    %550 = vmatprep.subr.mxu0 0.0
    %551 = vmatpush1.msra.mxu0 0.0
    %552 = vmatprep.subr.mxu0 0.0
    %553 = vmatpush1.msra.mxu0 0.0
    %554 = vmatprep.subr.mxu0 0.0
    %555 = vmatpush1.msra.mxu0 0.0
    %556 = vmatprep.subr.mxu0 0.0
    %557 = vmatpush1.msra.mxu0 0.0
    %558 = vmatprep.subr.mxu0 0.0
    %559 = vmatpush1.msra.mxu0 0.0
    %560 = vmatprep.subr.mxu0 0.0
    %561 = vmatpush1.msra.mxu0 0.0
    %562 = vmatprep.subr.mxu0 0.0
    %563 = vmatpush1.msra.mxu0 0.0
    %564 = vmatprep.subr.mxu0 0.0
    %565 = vmatpush1.msra.mxu0 0.0
    %566 = vmatprep.subr.mxu0 0.0
    %567 = vmatpush1.msra.mxu0 0.0
    %568 = vmatprep.subr.mxu0 0.0
    %569 = vmatpush1.msra.mxu0 0.0
    %570 = vmatprep.mubr.f32.mxu0 0.0
    %571 = vmatmul.mubr.f32.gmra.mrb[0].mxu0 %v504
    %v572 = vpop.f32.mrb[0].mxu0
    %v573 = vadd.f32 0.0, %v572
    %v574 = vpop.f32.mrb[0].mxu0
    %575 = vdwg.mxu0
    %v576 = vadd.f32 %v190, %v573
    %v577 = vtanh.pop %v576
    %v579 = vsel %vm202, %v577, 0
    %581 = vmatprep.subr.mxu0 0.0
    %582 = vmatpush1.msra.mxu0 %v39
    %583 = vmatprep.subr.mxu0 0.0
    %584 = vmatpush1.msra.mxu0 %v40
    %585 = vmatprep.subr.mxu0 0.0
    %586 = vmatpush1.msra.mxu0 %v41
    %587 = vmatprep.subr.mxu0 0.0
    %588 = vmatpush1.msra.mxu0 %v42
    %589 = vmatprep.subr.mxu0 0.0
    %590 = vmatpush1.msra.mxu0 0.0
    %591 = vmatprep.subr.mxu0 0.0
    %592 = vmatpush1.msra.mxu0 0.0
    %593 = vmatprep.subr.mxu0 0.0
    %594 = vmatpush1.msra.mxu0 0.0
    %595 = vmatprep.subr.mxu0 0.0
    %596 = vmatpush1.msra.mxu0 0.0
    %597 = vmatprep.subr.mxu0 0.0
    %598 = vmatpush1.msra.mxu0 0.0
    %599 = vmatprep.subr.mxu0 0.0
    %600 = vmatpush1.msra.mxu0 0.0
    %601 = vmatprep.subr.mxu0 0.0
    %602 = vmatpush1.msra.mxu0 0.0
    %603 = vmatprep.subr.mxu0 0.0
    %604 = vmatpush1.msra.mxu0 0.0
    %605 = vmatprep.subr.mxu0 0.0
    %606 = vmatpush1.msra.mxu0 0.0
    %607 = vmatprep.subr.mxu0 0.0
    %608 = vmatpush1.msra.mxu0 0.0
    %609 = vmatprep.subr.mxu0 0.0
    %610 = vmatpush1.msra.mxu0 0.0
    %611 = vmatprep.subr.mxu0 0.0
    %612 = vmatpush1.msra.mxu0 0.0
    %613 = vmatprep.subr.mxu0 0.0
    %614 = vmatpush1.msra.mxu0 0.0
    %615 = vmatprep.subr.mxu0 0.0
    %616 = vmatpush1.msra.mxu0 0.0
    %617 = vmatprep.subr.mxu0 0.0
    %618 = vmatpush1.msra.mxu0 0.0
    %619 = vmatprep.subr.mxu0 0.0
    %620 = vmatpush1.msra.mxu0 0.0
    %621 = vmatprep.subr.mxu0 0.0
    %622 = vmatpush1.msra.mxu0 0.0
    %623 = vmatprep.subr.mxu0 0.0
    %624 = vmatpush1.msra.mxu0 0.0
    %625 = vmatprep.subr.mxu0 0.0
    %626 = vmatpush1.msra.mxu0 0.0
    %627 = vmatprep.subr.mxu0 0.0
    %628 = vmatpush1.msra.mxu0 0.0
    %629 = vmatprep.subr.mxu0 0.0
    %630 = vmatpush1.msra.mxu0 0.0
    %631 = vmatprep.subr.mxu0 0.0
    %632 = vmatpush1.msra.mxu0 0.0
    %633 = vmatprep.subr.mxu0 0.0
    %634 = vmatpush1.msra.mxu0 0.0
    %635 = vmatprep.subr.mxu0 0.0
    %636 = vmatpush1.msra.mxu0 0.0
    %637 = vmatprep.subr.mxu0 0.0
    %638 = vmatpush1.msra.mxu0 0.0
    %639 = vmatprep.subr.mxu0 0.0
    %640 = vmatpush1.msra.mxu0 0.0
    %641 = vmatprep.subr.mxu0 0.0
    %642 = vmatpush1.msra.mxu0 0.0
    %643 = vmatprep.subr.mxu0 0.0
    %644 = vmatpush1.msra.mxu0 0.0
    %645 = vmatprep.mubr.f32.mxu0 0.0
    %646 = vmatmul.mubr.f32.gmra.mrb[0].mxu0 %v579
    %v647 = vpop.f32.mrb[0].mxu0
    %v648 = vadd.f32 0.0, %v647
    %v649 = vpop.f32.mrb[0].mxu0
    %650 = vdwg.mxu0
    %v651 = vadd.f32 %v191, %v648
    %v652 = vtanh.pop %v651
    %v654 = vsel %vm202, %v652, 0
    %656 = vmatprep.subr.mxu0 0.0
    %657 = vmatpush1.msra.mxu0 %v39
    %658 = vmatprep.subr.mxu0 0.0
    %659 = vmatpush1.msra.mxu0 %v40
    %660 = vmatprep.subr.mxu0 0.0
    %661 = vmatpush1.msra.mxu0 %v41
    %662 = vmatprep.subr.mxu0 0.0
    %663 = vmatpush1.msra.mxu0 %v42
    %664 = vmatprep.subr.mxu0 0.0
    %665 = vmatpush1.msra.mxu0 0.0
    %666 = vmatprep.subr.mxu0 0.0
    %667 = vmatpush1.msra.mxu0 0.0
    %668 = vmatprep.subr.mxu0 0.0
    %669 = vmatpush1.msra.mxu0 0.0
    %670 = vmatprep.subr.mxu0 0.0
    %671 = vmatpush1.msra.mxu0 0.0
    %672 = vmatprep.subr.mxu0 0.0
    %673 = vmatpush1.msra.mxu0 0.0
    %674 = vmatprep.subr.mxu0 0.0
    %675 = vmatpush1.msra.mxu0 0.0
    %676 = vmatprep.subr.mxu0 0.0
    %677 = vmatpush1.msra.mxu0 0.0
    %678 = vmatprep.subr.mxu0 0.0
    %679 = vmatpush1.msra.mxu0 0.0
    %680 = vmatprep.subr.mxu0 0.0
    %681 = vmatpush1.msra.mxu0 0.0
    %682 = vmatprep.subr.mxu0 0.0
    %683 = vmatpush1.msra.mxu0 0.0
    %684 = vmatprep.subr.mxu0 0.0
    %685 = vmatpush1.msra.mxu0 0.0
    %686 = vmatprep.subr.mxu0 0.0
    %687 = vmatpush1.msra.mxu0 0.0
    %688 = vmatprep.subr.mxu0 0.0
    %689 = vmatpush1.msra.mxu0 0.0
    %690 = vmatprep.subr.mxu0 0.0
    %691 = vmatpush1.msra.mxu0 0.0
    %692 = vmatprep.subr.mxu0 0.0
    %693 = vmatpush1.msra.mxu0 0.0
    %694 = vmatprep.subr.mxu0 0.0
    %695 = vmatpush1.msra.mxu0 0.0
    %696 = vmatprep.subr.mxu0 0.0
    %697 = vmatpush1.msra.mxu0 0.0
    %698 = vmatprep.subr.mxu0 0.0
    %699 = vmatpush1.msra.mxu0 0.0
    %700 = vmatprep.subr.mxu0 0.0
    %701 = vmatpush1.msra.mxu0 0.0
    %702 = vmatprep.subr.mxu0 0.0
    %703 = vmatpush1.msra.mxu0 0.0
    %704 = vmatprep.subr.mxu0 0.0
    %705 = vmatpush1.msra.mxu0 0.0
    %706 = vmatprep.subr.mxu0 0.0
    %707 = vmatpush1.msra.mxu0 0.0
    %708 = vmatprep.subr.mxu0 0.0
    %709 = vmatpush1.msra.mxu0 0.0
    %710 = vmatprep.subr.mxu0 0.0
    %711 = vmatpush1.msra.mxu0 0.0
    %712 = vmatprep.subr.mxu0 0.0
    %713 = vmatpush1.msra.mxu0 0.0
    %714 = vmatprep.subr.mxu0 0.0
    %715 = vmatpush1.msra.mxu0 0.0
    %716 = vmatprep.subr.mxu0 0.0
    %717 = vmatpush1.msra.mxu0 0.0
    %718 = vmatprep.subr.mxu0 0.0
    %719 = vmatpush1.msra.mxu0 0.0
    %720 = vmatprep.mubr.f32.mxu0 0.0
    %721 = vmatmul.mubr.f32.gmra.mrb[0].mxu0 %v654
    %v722 = vpop.f32.mrb[0].mxu0
    %v723 = vadd.f32 0.0, %v722
    %v724 = vpop.f32.mrb[0].mxu0
    %725 = vdwg.mxu0
    %v726 = vadd.f32 %v192, %v723
    %v727 = vtanh.pop %v726
    %v729 = vsel %vm202, %v727, 0
    %731 = vmatprep.subr.mxu0 0.0
    %732 = vmatpush1.msra.mxu0 %v39
    %733 = vmatprep.subr.mxu0 0.0
    %734 = vmatpush1.msra.mxu0 %v40
    %735 = vmatprep.subr.mxu0 0.0
    %736 = vmatpush1.msra.mxu0 %v41
    %737 = vmatprep.subr.mxu0 0.0
    %738 = vmatpush1.msra.mxu0 %v42
    %739 = vmatprep.subr.mxu0 0.0
    %740 = vmatpush1.msra.mxu0 0.0
    %741 = vmatprep.subr.mxu0 0.0
    %742 = vmatpush1.msra.mxu0 0.0
    %743 = vmatprep.subr.mxu0 0.0
    %744 = vmatpush1.msra.mxu0 0.0
    %745 = vmatprep.subr.mxu0 0.0
    %746 = vmatpush1.msra.mxu0 0.0
    %747 = vmatprep.subr.mxu0 0.0
    %748 = vmatpush1.msra.mxu0 0.0
    %749 = vmatprep.subr.mxu0 0.0
    %750 = vmatpush1.msra.mxu0 0.0
    %751 = vmatprep.subr.mxu0 0.0
    %752 = vmatpush1.msra.mxu0 0.0
    %753 = vmatprep.subr.mxu0 0.0
    %754 = vmatpush1.msra.mxu0 0.0
    %755 = vmatprep.subr.mxu0 0.0
    %756 = vmatpush1.msra.mxu0 0.0
    %757 = vmatprep.subr.mxu0 0.0
    %758 = vmatpush1.msra.mxu0 0.0
    %759 = vmatprep.subr.mxu0 0.0
    %760 = vmatpush1.msra.mxu0 0.0
    %761 = vmatprep.subr.mxu0 0.0
    %762 = vmatpush1.msra.mxu0 0.0
    %763 = vmatprep.subr.mxu0 0.0
    %764 = vmatpush1.msra.mxu0 0.0
    %765 = vmatprep.subr.mxu0 0.0
    %766 = vmatpush1.msra.mxu0 0.0
    %767 = vmatprep.subr.mxu0 0.0
    %768 = vmatpush1.msra.mxu0 0.0
    %769 = vmatprep.subr.mxu0 0.0
    %770 = vmatpush1.msra.mxu0 0.0
    %771 = vmatprep.subr.mxu0 0.0
    %772 = vmatpush1.msra.mxu0 0.0
    %773 = vmatprep.subr.mxu0 0.0
    %774 = vmatpush1.msra.mxu0 0.0
    %775 = vmatprep.subr.mxu0 0.0
    %776 = vmatpush1.msra.mxu0 0.0
    %777 = vmatprep.subr.mxu0 0.0
    %778 = vmatpush1.msra.mxu0 0.0
    %779 = vmatprep.subr.mxu0 0.0
    %780 = vmatpush1.msra.mxu0 0.0
    %781 = vmatprep.subr.mxu0 0.0
    %782 = vmatpush1.msra.mxu0 0.0
    %783 = vmatprep.subr.mxu0 0.0
    %784 = vmatpush1.msra.mxu0 0.0
    %785 = vmatprep.subr.mxu0 0.0
    %786 = vmatpush1.msra.mxu0 0.0
    %787 = vmatprep.subr.mxu0 0.0
    %788 = vmatpush1.msra.mxu0 0.0
    %789 = vmatprep.subr.mxu0 0.0
    %790 = vmatpush1.msra.mxu0 0.0
    %791 = vmatprep.subr.mxu0 0.0
    %792 = vmatpush1.msra.mxu0 0.0
    %793 = vmatprep.subr.mxu0 0.0
    %794 = vmatpush1.msra.mxu0 0.0
    %795 = vmatprep.mubr.f32.mxu0 0.0
    %796 = vmatmul.mubr.f32.gmra.mrb[0].mxu0 %v729
    %v797 = vpop.f32.mrb[0].mxu0
    %v798 = vadd.f32 0.0, %v797
    %v799 = vpop.f32.mrb[0].mxu0
    %800 = vdwg.mxu0
    %v801 = vadd.f32 %v193, %v798
    %v802 = vtanh.pop %v801
    %v804 = vsel %vm202, %v802, 0
    %806 = vmatprep.subr.mxu0 0.0
    %807 = vmatpush1.msra.mxu0 %v39
    %808 = vmatprep.subr.mxu0 0.0
    %809 = vmatpush1.msra.mxu0 %v40
    %810 = vmatprep.subr.mxu0 0.0
    %811 = vmatpush1.msra.mxu0 %v41
    %812 = vmatprep.subr.mxu0 0.0
    %813 = vmatpush1.msra.mxu0 %v42
    %814 = vmatprep.subr.mxu0 0.0
    %815 = vmatpush1.msra.mxu0 0.0
    %816 = vmatprep.subr.mxu0 0.0
    %817 = vmatpush1.msra.mxu0 0.0
    %818 = vmatprep.subr.mxu0 0.0
    %819 = vmatpush1.msra.mxu0 0.0
    %820 = vmatprep.subr.mxu0 0.0
    %821 = vmatpush1.msra.mxu0 0.0
    %822 = vmatprep.subr.mxu0 0.0
    %823 = vmatpush1.msra.mxu0 0.0
    %824 = vmatprep.subr.mxu0 0.0
    %825 = vmatpush1.msra.mxu0 0.0
    %826 = vmatprep.subr.mxu0 0.0
    %827 = vmatpush1.msra.mxu0 0.0
    %828 = vmatprep.subr.mxu0 0.0
    %829 = vmatpush1.msra.mxu0 0.0
    %830 = vmatprep.subr.mxu0 0.0
    %831 = vmatpush1.msra.mxu0 0.0
    %832 = vmatprep.subr.mxu0 0.0
    %833 = vmatpush1.msra.mxu0 0.0
    %834 = vmatprep.subr.mxu0 0.0
    %835 = vmatpush1.msra.mxu0 0.0
    %836 = vmatprep.subr.mxu0 0.0
    %837 = vmatpush1.msra.mxu0 0.0
    %838 = vmatprep.subr.mxu0 0.0
    %839 = vmatpush1.msra.mxu0 0.0
    %840 = vmatprep.subr.mxu0 0.0
    %841 = vmatpush1.msra.mxu0 0.0
    %842 = vmatprep.subr.mxu0 0.0
    %843 = vmatpush1.msra.mxu0 0.0
    %844 = vmatprep.subr.mxu0 0.0
    %845 = vmatpush1.msra.mxu0 0.0
    %846 = vmatprep.subr.mxu0 0.0
    %847 = vmatpush1.msra.mxu0 0.0
    %848 = vmatprep.subr.mxu0 0.0
    %849 = vmatpush1.msra.mxu0 0.0
    %850 = vmatprep.subr.mxu0 0.0
    %851 = vmatpush1.msra.mxu0 0.0
    %852 = vmatprep.subr.mxu0 0.0
    %853 = vmatpush1.msra.mxu0 0.0
    %854 = vmatprep.subr.mxu0 0.0
    %855 = vmatpush1.msra.mxu0 0.0
    %856 = vmatprep.subr.mxu0 0.0
    %857 = vmatpush1.msra.mxu0 0.0
    %858 = vmatprep.subr.mxu0 0.0
    %859 = vmatpush1.msra.mxu0 0.0
    %860 = vmatprep.subr.mxu0 0.0
    %861 = vmatpush1.msra.mxu0 0.0
    %862 = vmatprep.subr.mxu0 0.0
    %863 = vmatpush1.msra.mxu0 0.0
    %864 = vmatprep.subr.mxu0 0.0
    %865 = vmatpush1.msra.mxu0 0.0
    %866 = vmatprep.subr.mxu0 0.0
    %867 = vmatpush1.msra.mxu0 0.0
    %868 = vmatprep.subr.mxu0 0.0
    %869 = vmatpush1.msra.mxu0 0.0
    %870 = vmatprep.mubr.f32.mxu0 0.0
    %871 = vmatmul.mubr.f32.gmra.mrb[0].mxu0 %v804
    %v872 = vpop.f32.mrb[0].mxu0
    %v873 = vadd.f32 0.0, %v872
    %v874 = vpop.f32.mrb[0].mxu0
    %875 = vdwg.mxu0
    %v876 = vadd.f32 %v194, %v873
    %v877 = vtanh.pop %v876
    %v879 = vsel %vm202, %v877, 0
    %881 = vmatprep.subr.mxu0 0.0
    %882 = vmatpush1.msra.mxu0 %v39
    %883 = vmatprep.subr.mxu0 0.0
    %884 = vmatpush1.msra.mxu0 %v40
    %885 = vmatprep.subr.mxu0 0.0
    %886 = vmatpush1.msra.mxu0 %v41
    %887 = vmatprep.subr.mxu0 0.0
    %888 = vmatpush1.msra.mxu0 %v42
    %889 = vmatprep.subr.mxu0 0.0
    %890 = vmatpush1.msra.mxu0 0.0
    %891 = vmatprep.subr.mxu0 0.0
    %892 = vmatpush1.msra.mxu0 0.0
    %893 = vmatprep.subr.mxu0 0.0
    %894 = vmatpush1.msra.mxu0 0.0
    %895 = vmatprep.subr.mxu0 0.0
    %896 = vmatpush1.msra.mxu0 0.0
    %897 = vmatprep.subr.mxu0 0.0
    %898 = vmatpush1.msra.mxu0 0.0
    %899 = vmatprep.subr.mxu0 0.0
    %900 = vmatpush1.msra.mxu0 0.0
    %901 = vmatprep.subr.mxu0 0.0
    %902 = vmatpush1.msra.mxu0 0.0
    %903 = vmatprep.subr.mxu0 0.0
    %904 = vmatpush1.msra.mxu0 0.0
    %905 = vmatprep.subr.mxu0 0.0
    %906 = vmatpush1.msra.mxu0 0.0
    %907 = vmatprep.subr.mxu0 0.0
    %908 = vmatpush1.msra.mxu0 0.0
    %909 = vmatprep.subr.mxu0 0.0
    %910 = vmatpush1.msra.mxu0 0.0
    %911 = vmatprep.subr.mxu0 0.0
    %912 = vmatpush1.msra.mxu0 0.0
    %913 = vmatprep.subr.mxu0 0.0
    %914 = vmatpush1.msra.mxu0 0.0
    %915 = vmatprep.subr.mxu0 0.0
    %916 = vmatpush1.msra.mxu0 0.0
    %917 = vmatprep.subr.mxu0 0.0
    %918 = vmatpush1.msra.mxu0 0.0
    %919 = vmatprep.subr.mxu0 0.0
    %920 = vmatpush1.msra.mxu0 0.0
    %921 = vmatprep.subr.mxu0 0.0
    %922 = vmatpush1.msra.mxu0 0.0
    %923 = vmatprep.subr.mxu0 0.0
    %924 = vmatpush1.msra.mxu0 0.0
    %925 = vmatprep.subr.mxu0 0.0
    %926 = vmatpush1.msra.mxu0 0.0
    %927 = vmatprep.subr.mxu0 0.0
    %928 = vmatpush1.msra.mxu0 0.0
    %929 = vmatprep.subr.mxu0 0.0
    %930 = vmatpush1.msra.mxu0 0.0
    %931 = vmatprep.subr.mxu0 0.0
    %932 = vmatpush1.msra.mxu0 0.0
    %933 = vmatprep.subr.mxu0 0.0
    %934 = vmatpush1.msra.mxu0 0.0
    %935 = vmatprep.subr.mxu0 0.0
    %936 = vmatpush1.msra.mxu0 0.0
    %937 = vmatprep.subr.mxu0 0.0
    %938 = vmatpush1.msra.mxu0 0.0
    %939 = vmatprep.subr.mxu0 0.0
    %940 = vmatpush1.msra.mxu0 0.0
    %941 = vmatprep.subr.mxu0 0.0
    %942 = vmatpush1.msra.mxu0 0.0
    %943 = vmatprep.subr.mxu0 0.0
    %944 = vmatpush1.msra.mxu0 0.0
    %945 = vmatprep.mubr.f32.mxu0 0.0
    %946 = vmatmul.mubr.f32.gmra.mrb[0].mxu0 %v879
    %v947 = vpop.f32.mrb[0].mxu0
    %v948 = vadd.f32 0.0, %v947
    %v949 = vpop.f32.mrb[0].mxu0
    %950 = vdwg.mxu0
    %v951 = vadd.f32 %v195, %v948
    %v952 = vtanh.pop %v951
    %v954 = vsel %vm202, %v952, 0
    %956 = vmatprep.subr.mxu0 0.0
    %957 = vmatpush1.msra.mxu0 %v39
    %958 = vmatprep.subr.mxu0 0.0
    %959 = vmatpush1.msra.mxu0 %v40
    %960 = vmatprep.subr.mxu0 0.0
    %961 = vmatpush1.msra.mxu0 %v41
    %962 = vmatprep.subr.mxu0 0.0
    %963 = vmatpush1.msra.mxu0 %v42
    %964 = vmatprep.subr.mxu0 0.0
    %965 = vmatpush1.msra.mxu0 0.0
    %966 = vmatprep.subr.mxu0 0.0
    %967 = vmatpush1.msra.mxu0 0.0
    %968 = vmatprep.subr.mxu0 0.0
    %969 = vmatpush1.msra.mxu0 0.0
    %970 = vmatprep.subr.mxu0 0.0
    %971 = vmatpush1.msra.mxu0 0.0
    %972 = vmatprep.subr.mxu0 0.0
    %973 = vmatpush1.msra.mxu0 0.0
    %974 = vmatprep.subr.mxu0 0.0
    %975 = vmatpush1.msra.mxu0 0.0
    %976 = vmatprep.subr.mxu0 0.0
    %977 = vmatpush1.msra.mxu0 0.0
    %978 = vmatprep.subr.mxu0 0.0
    %979 = vmatpush1.msra.mxu0 0.0
    %980 = vmatprep.subr.mxu0 0.0
    %981 = vmatpush1.msra.mxu0 0.0
    %982 = vmatprep.subr.mxu0 0.0
    %983 = vmatpush1.msra.mxu0 0.0
    %984 = vmatprep.subr.mxu0 0.0
    %985 = vmatpush1.msra.mxu0 0.0
    %986 = vmatprep.subr.mxu0 0.0
    %987 = vmatpush1.msra.mxu0 0.0
    %988 = vmatprep.subr.mxu0 0.0
    %989 = vmatpush1.msra.mxu0 0.0
    %990 = vmatprep.subr.mxu0 0.0
    %991 = vmatpush1.msra.mxu0 0.0
    %992 = vmatprep.subr.mxu0 0.0
    %993 = vmatpush1.msra.mxu0 0.0
    %994 = vmatprep.subr.mxu0 0.0
    %995 = vmatpush1.msra.mxu0 0.0
    %996 = vmatprep.subr.mxu0 0.0
    %997 = vmatpush1.msra.mxu0 0.0
    %998 = vmatprep.subr.mxu0 0.0
    %999 = vmatpush1.msra.mxu0 0.0
    %1000 = vmatprep.subr.mxu0 0.0
    %1001 = vmatpush1.msra.mxu0 0.0
    %1002 = vmatprep.subr.mxu0 0.0
    %1003 = vmatpush1.msra.mxu0 0.0
    %1004 = vmatprep.subr.mxu0 0.0
    %1005 = vmatpush1.msra.mxu0 0.0
    %1006 = vmatprep.subr.mxu0 0.0
    %1007 = vmatpush1.msra.mxu0 0.0
    %1008 = vmatprep.subr.mxu0 0.0
    %1009 = vmatpush1.msra.mxu0 0.0
    %1010 = vmatprep.subr.mxu0 0.0
    %1011 = vmatpush1.msra.mxu0 0.0
    %1012 = vmatprep.subr.mxu0 0.0
    %1013 = vmatpush1.msra.mxu0 0.0
    %1014 = vmatprep.subr.mxu0 0.0
    %1015 = vmatpush1.msra.mxu0 0.0
    %1016 = vmatprep.subr.mxu0 0.0
    %1017 = vmatpush1.msra.mxu0 0.0
    %1018 = vmatprep.subr.mxu0 0.0
    %1019 = vmatpush1.msra.mxu0 0.0
    %1020 = vmatprep.mubr.f32.mxu0 0.0
    %1021 = vmatmul.mubr.f32.gmra.mrb[0].mxu0 %v954
    %v1022 = vpop.f32.mrb[0].mxu0
    %v1023 = vadd.f32 0.0, %v1022
    %v1024 = vpop.f32.mrb[0].mxu0
    %1025 = vdwg.mxu0
    %v1026 = vadd.f32 %v196, %v1023
    %v1027 = vtanh.pop %v1026
    %v1029 = vsel %vm202, %v1027, 0
    %1031 = vmatprep.subr.mxu0 0.0
    %1032 = vmatpush1.msra.mxu0 %v39
    %1033 = vmatprep.subr.mxu0 0.0
    %1034 = vmatpush1.msra.mxu0 %v40
    %1035 = vmatprep.subr.mxu0 0.0
    %1036 = vmatpush1.msra.mxu0 %v41
    %1037 = vmatprep.subr.mxu0 0.0
    %1038 = vmatpush1.msra.mxu0 %v42
    %1039 = vmatprep.subr.mxu0 0.0
    %1040 = vmatpush1.msra.mxu0 0.0
    %1041 = vmatprep.subr.mxu0 0.0
    %1042 = vmatpush1.msra.mxu0 0.0
    %1043 = vmatprep.subr.mxu0 0.0
    %1044 = vmatpush1.msra.mxu0 0.0
    %1045 = vmatprep.subr.mxu0 0.0
    %1046 = vmatpush1.msra.mxu0 0.0
    %1047 = vmatprep.subr.mxu0 0.0
    %1048 = vmatpush1.msra.mxu0 0.0
    %1049 = vmatprep.subr.mxu0 0.0
    %1050 = vmatpush1.msra.mxu0 0.0
    %1051 = vmatprep.subr.mxu0 0.0
    %1052 = vmatpush1.msra.mxu0 0.0
    %1053 = vmatprep.subr.mxu0 0.0
    %1054 = vmatpush1.msra.mxu0 0.0
    %1055 = vmatprep.subr.mxu0 0.0
    %1056 = vmatpush1.msra.mxu0 0.0
    %1057 = vmatprep.subr.mxu0 0.0
    %1058 = vmatpush1.msra.mxu0 0.0
    %1059 = vmatprep.subr.mxu0 0.0
    %1060 = vmatpush1.msra.mxu0 0.0
    %1061 = vmatprep.subr.mxu0 0.0
    %1062 = vmatpush1.msra.mxu0 0.0
    %1063 = vmatprep.subr.mxu0 0.0
    %1064 = vmatpush1.msra.mxu0 0.0
    %1065 = vmatprep.subr.mxu0 0.0
    %1066 = vmatpush1.msra.mxu0 0.0
    %1067 = vmatprep.subr.mxu0 0.0
    %1068 = vmatpush1.msra.mxu0 0.0
    %1069 = vmatprep.subr.mxu0 0.0
    %1070 = vmatpush1.msra.mxu0 0.0
    %1071 = vmatprep.subr.mxu0 0.0
    %1072 = vmatpush1.msra.mxu0 0.0
    %1073 = vmatprep.subr.mxu0 0.0
    %1074 = vmatpush1.msra.mxu0 0.0
    %1075 = vmatprep.subr.mxu0 0.0
    %1076 = vmatpush1.msra.mxu0 0.0
    %1077 = vmatprep.subr.mxu0 0.0
    %1078 = vmatpush1.msra.mxu0 0.0
    %1079 = vmatprep.subr.mxu0 0.0
    %1080 = vmatpush1.msra.mxu0 0.0
    %1081 = vmatprep.subr.mxu0 0.0
    %1082 = vmatpush1.msra.mxu0 0.0
    %1083 = vmatprep.subr.mxu0 0.0
    %1084 = vmatpush1.msra.mxu0 0.0
    %1085 = vmatprep.subr.mxu0 0.0
    %1086 = vmatpush1.msra.mxu0 0.0
    %1087 = vmatprep.subr.mxu0 0.0
    %1088 = vmatpush1.msra.mxu0 0.0
    %1089 = vmatprep.subr.mxu0 0.0
    %1090 = vmatpush1.msra.mxu0 0.0
    %1091 = vmatprep.subr.mxu0 0.0
    %1092 = vmatpush1.msra.mxu0 0.0
    %1093 = vmatprep.subr.mxu0 0.0
    %1094 = vmatpush1.msra.mxu0 0.0
    %1095 = vmatprep.mubr.f32.mxu0 0.0
    %1096 = vmatmul.mubr.f32.gmra.mrb[0].mxu0 %v1029
    %v1097 = vpop.f32.mrb[0].mxu0
    %v1098 = vadd.f32 0.0, %v1097
    %v1099 = vpop.f32.mrb[0].mxu0
    %1100 = vdwg.mxu0
    %v1101 = vadd.f32 %v197, %v1098
    %v1102 = vtanh.pop %v1101
    %v1104 = vsel %vm202, %v1102, 0
    %1106 = vmatprep.subr.mxu0 0.0
    %1107 = vmatpush1.msra.mxu0 %v39
    %1108 = vmatprep.subr.mxu0 0.0
    %1109 = vmatpush1.msra.mxu0 %v40
    %1110 = vmatprep.subr.mxu0 0.0
    %1111 = vmatpush1.msra.mxu0 %v41
    %1112 = vmatprep.subr.mxu0 0.0
    %1113 = vmatpush1.msra.mxu0 %v42
    %1114 = vmatprep.subr.mxu0 0.0
    %1115 = vmatpush1.msra.mxu0 0.0
    %1116 = vmatprep.subr.mxu0 0.0
    %1117 = vmatpush1.msra.mxu0 0.0
    %1118 = vmatprep.subr.mxu0 0.0
    %1119 = vmatpush1.msra.mxu0 0.0
    %1120 = vmatprep.subr.mxu0 0.0
    %1121 = vmatpush1.msra.mxu0 0.0
    %1122 = vmatprep.subr.mxu0 0.0
    %1123 = vmatpush1.msra.mxu0 0.0
    %1124 = vmatprep.subr.mxu0 0.0
    %1125 = vmatpush1.msra.mxu0 0.0
    %1126 = vmatprep.subr.mxu0 0.0
    %1127 = vmatpush1.msra.mxu0 0.0
    %1128 = vmatprep.subr.mxu0 0.0
    %1129 = vmatpush1.msra.mxu0 0.0
    %1130 = vmatprep.subr.mxu0 0.0
    %1131 = vmatpush1.msra.mxu0 0.0
    %1132 = vmatprep.subr.mxu0 0.0
    %1133 = vmatpush1.msra.mxu0 0.0
    %1134 = vmatprep.subr.mxu0 0.0
    %1135 = vmatpush1.msra.mxu0 0.0
    %1136 = vmatprep.subr.mxu0 0.0
    %1137 = vmatpush1.msra.mxu0 0.0
    %1138 = vmatprep.subr.mxu0 0.0
    %1139 = vmatpush1.msra.mxu0 0.0
    %1140 = vmatprep.subr.mxu0 0.0
    %1141 = vmatpush1.msra.mxu0 0.0
    %1142 = vmatprep.subr.mxu0 0.0
    %1143 = vmatpush1.msra.mxu0 0.0
    %1144 = vmatprep.subr.mxu0 0.0
    %1145 = vmatpush1.msra.mxu0 0.0
    %1146 = vmatprep.subr.mxu0 0.0
    %1147 = vmatpush1.msra.mxu0 0.0
    %1148 = vmatprep.subr.mxu0 0.0
    %1149 = vmatpush1.msra.mxu0 0.0
    %1150 = vmatprep.subr.mxu0 0.0
    %1151 = vmatpush1.msra.mxu0 0.0
    %1152 = vmatprep.subr.mxu0 0.0
    %1153 = vmatpush1.msra.mxu0 0.0
    %1154 = vmatprep.subr.mxu0 0.0
    %1155 = vmatpush1.msra.mxu0 0.0
    %1156 = vmatprep.subr.mxu0 0.0
    %1157 = vmatpush1.msra.mxu0 0.0
    %1158 = vmatprep.subr.mxu0 0.0
    %1159 = vmatpush1.msra.mxu0 0.0
    %1160 = vmatprep.subr.mxu0 0.0
    %1161 = vmatpush1.msra.mxu0 0.0
    %1162 = vmatprep.subr.mxu0 0.0
    %1163 = vmatpush1.msra.mxu0 0.0
    %1164 = vmatprep.subr.mxu0 0.0
    %1165 = vmatpush1.msra.mxu0 0.0
    %1166 = vmatprep.subr.mxu0 0.0
    %1167 = vmatpush1.msra.mxu0 0.0
    %1168 = vmatprep.subr.mxu0 0.0
    %1169 = vmatpush1.msra.mxu0 0.0
    %1170 = vmatprep.mubr.f32.mxu0 0.0
    %1171 = vmatmul.mubr.f32.gmra.mrb[0].mxu0 %v1104
    %v1172 = vpop.f32.mrb[0].mxu0
    %v1173 = vadd.f32 0.0, %v1172
    %v1174 = vpop.f32.mrb[0].mxu0
    %1175 = vdwg.mxu0
    %v1176 = vadd.f32 %v198, %v1173
    %v1177 = vtanh.pop %v1176
    %v1179 = vsel %vm202, %v1177, 0
    %1181 = vmatprep.subr.mxu0 0.0
    %1182 = vmatpush1.msra.mxu0 %v39
    %1183 = vmatprep.subr.mxu0 0.0
    %1184 = vmatpush1.msra.mxu0 %v40
    %1185 = vmatprep.subr.mxu0 0.0
    %1186 = vmatpush1.msra.mxu0 %v41
    %1187 = vmatprep.subr.mxu0 0.0
    %1188 = vmatpush1.msra.mxu0 %v42
    %1189 = vmatprep.subr.mxu0 0.0
    %1190 = vmatpush1.msra.mxu0 0.0
    %1191 = vmatprep.subr.mxu0 0.0
    %1192 = vmatpush1.msra.mxu0 0.0
    %1193 = vmatprep.subr.mxu0 0.0
    %1194 = vmatpush1.msra.mxu0 0.0
    %1195 = vmatprep.subr.mxu0 0.0
    %1196 = vmatpush1.msra.mxu0 0.0
    %1197 = vmatprep.subr.mxu0 0.0
    %1198 = vmatpush1.msra.mxu0 0.0
    %1199 = vmatprep.subr.mxu0 0.0
    %1200 = vmatpush1.msra.mxu0 0.0
    %1201 = vmatprep.subr.mxu0 0.0
    %1202 = vmatpush1.msra.mxu0 0.0
    %1203 = vmatprep.subr.mxu0 0.0
    %1204 = vmatpush1.msra.mxu0 0.0
    %1205 = vmatprep.subr.mxu0 0.0
    %1206 = vmatpush1.msra.mxu0 0.0
    %1207 = vmatprep.subr.mxu0 0.0
    %1208 = vmatpush1.msra.mxu0 0.0
    %1209 = vmatprep.subr.mxu0 0.0
    %1210 = vmatpush1.msra.mxu0 0.0
    %1211 = vmatprep.subr.mxu0 0.0
    %1212 = vmatpush1.msra.mxu0 0.0
    %1213 = vmatprep.subr.mxu0 0.0
    %1214 = vmatpush1.msra.mxu0 0.0
    %1215 = vmatprep.subr.mxu0 0.0
    %1216 = vmatpush1.msra.mxu0 0.0
    %1217 = vmatprep.subr.mxu0 0.0
    %1218 = vmatpush1.msra.mxu0 0.0
    %1219 = vmatprep.subr.mxu0 0.0
    %1220 = vmatpush1.msra.mxu0 0.0
    %1221 = vmatprep.subr.mxu0 0.0
    %1222 = vmatpush1.msra.mxu0 0.0
    %1223 = vmatprep.subr.mxu0 0.0
    %1224 = vmatpush1.msra.mxu0 0.0
    %1225 = vmatprep.subr.mxu0 0.0
    %1226 = vmatpush1.msra.mxu0 0.0
    %1227 = vmatprep.subr.mxu0 0.0
    %1228 = vmatpush1.msra.mxu0 0.0
    %1229 = vmatprep.subr.mxu0 0.0
    %1230 = vmatpush1.msra.mxu0 0.0
    %1231 = vmatprep.subr.mxu0 0.0
    %1232 = vmatpush1.msra.mxu0 0.0
    %1233 = vmatprep.subr.mxu0 0.0
    %1234 = vmatpush1.msra.mxu0 0.0
    %1235 = vmatprep.subr.mxu0 0.0
    %1236 = vmatpush1.msra.mxu0 0.0
    %1237 = vmatprep.subr.mxu0 0.0
    %1238 = vmatpush1.msra.mxu0 0.0
    %1239 = vmatprep.subr.mxu0 0.0
    %1240 = vmatpush1.msra.mxu0 0.0
    %1241 = vmatprep.subr.mxu0 0.0
    %1242 = vmatpush1.msra.mxu0 0.0
    %1243 = vmatprep.subr.mxu0 0.0
    %1244 = vmatpush1.msra.mxu0 0.0
    %1245 = vmatprep.mubr.f32.mxu0 0.0
    %1246 = vmatmul.mubr.f32.gmra.mrb[0].mxu0 %v1179
    %v1247 = vpop.f32.mrb[0].mxu0
    %v1248 = vadd.f32 0.0, %v1247
    %v1249 = vpop.f32.mrb[0].mxu0
    %1250 = vdwg.mxu0
    %v1251 = vadd.f32 %v199, %v1248
    %v1252 = vtanh.pop %v1251
    %v1254 = vsel %vm202, %v1252, 0
    %1256 = vmatprep.subr.mxu0 0.0
    %1257 = vmatpush1.msra.mxu0 %v39
    %1258 = vmatprep.subr.mxu0 0.0
    %1259 = vmatpush1.msra.mxu0 %v40
    %1260 = vmatprep.subr.mxu0 0.0
    %1261 = vmatpush1.msra.mxu0 %v41
    %1262 = vmatprep.subr.mxu0 0.0
    %1263 = vmatpush1.msra.mxu0 %v42
    %1264 = vmatprep.subr.mxu0 0.0
    %1265 = vmatpush1.msra.mxu0 0.0
    %1266 = vmatprep.subr.mxu0 0.0
    %1267 = vmatpush1.msra.mxu0 0.0
    %1268 = vmatprep.subr.mxu0 0.0
    %1269 = vmatpush1.msra.mxu0 0.0
    %1270 = vmatprep.subr.mxu0 0.0
    %1271 = vmatpush1.msra.mxu0 0.0
    %1272 = vmatprep.subr.mxu0 0.0
    %1273 = vmatpush1.msra.mxu0 0.0
    %1274 = vmatprep.subr.mxu0 0.0
    %1275 = vmatpush1.msra.mxu0 0.0
    %1276 = vmatprep.subr.mxu0 0.0
    %1277 = vmatpush1.msra.mxu0 0.0
    %1278 = vmatprep.subr.mxu0 0.0
    %1279 = vmatpush1.msra.mxu0 0.0
    %1280 = vmatprep.subr.mxu0 0.0
    %1281 = vmatpush1.msra.mxu0 0.0
    %1282 = vmatprep.subr.mxu0 0.0
    %1283 = vmatpush1.msra.mxu0 0.0
    %1284 = vmatprep.subr.mxu0 0.0
    %1285 = vmatpush1.msra.mxu0 0.0
    %1286 = vmatprep.subr.mxu0 0.0
    %1287 = vmatpush1.msra.mxu0 0.0
    %1288 = vmatprep.subr.mxu0 0.0
    %1289 = vmatpush1.msra.mxu0 0.0
    %1290 = vmatprep.subr.mxu0 0.0
    %1291 = vmatpush1.msra.mxu0 0.0
    %1292 = vmatprep.subr.mxu0 0.0
    %1293 = vmatpush1.msra.mxu0 0.0
    %1294 = vmatprep.subr.mxu0 0.0
    %1295 = vmatpush1.msra.mxu0 0.0
    %1296 = vmatprep.subr.mxu0 0.0
    %1297 = vmatpush1.msra.mxu0 0.0
    %1298 = vmatprep.subr.mxu0 0.0
    %1299 = vmatpush1.msra.mxu0 0.0
    %1300 = vmatprep.subr.mxu0 0.0
    %1301 = vmatpush1.msra.mxu0 0.0
    %1302 = vmatprep.subr.mxu0 0.0
    %1303 = vmatpush1.msra.mxu0 0.0
    %1304 = vmatprep.subr.mxu0 0.0
    %1305 = vmatpush1.msra.mxu0 0.0
    %1306 = vmatprep.subr.mxu0 0.0
    %1307 = vmatpush1.msra.mxu0 0.0
    %1308 = vmatprep.subr.mxu0 0.0
    %1309 = vmatpush1.msra.mxu0 0.0
    %1310 = vmatprep.subr.mxu0 0.0
    %1311 = vmatpush1.msra.mxu0 0.0
    %1312 = vmatprep.subr.mxu0 0.0
    %1313 = vmatpush1.msra.mxu0 0.0
    %1314 = vmatprep.subr.mxu0 0.0
    %1315 = vmatpush1.msra.mxu0 0.0
    %1316 = vmatprep.subr.mxu0 0.0
    %1317 = vmatpush1.msra.mxu0 0.0
    %1318 = vmatprep.subr.mxu0 0.0
    %1319 = vmatpush1.msra.mxu0 0.0
    %1320 = vmatprep.mubr.f32.mxu0 0.0
    %1321 = vmatmul.mubr.f32.gmra.mrb[0].mxu0 %v1254
    %v1322 = vpop.f32.mrb[0].mxu0
    %v1323 = vadd.f32 0.0, %v1322
    %v1324 = vpop.f32.mrb[0].mxu0
    %1325 = vdwg.mxu0
    %v1326 = vadd.f32 %v200, %v1323
    %v1327 = vtanh.pop %v1326
    %v1329 = vsel %vm202, %v1327, 0
    %1331 = vmatprep.subr.mxu0 0.0
    %1332 = vmatpush1.msra.mxu0 %v39
    %1333 = vmatprep.subr.mxu0 0.0
    %1334 = vmatpush1.msra.mxu0 %v40
    %1335 = vmatprep.subr.mxu0 0.0
    %1336 = vmatpush1.msra.mxu0 %v41
    %1337 = vmatprep.subr.mxu0 0.0
    %1338 = vmatpush1.msra.mxu0 %v42
    %1339 = vmatprep.subr.mxu0 0.0
    %1340 = vmatpush1.msra.mxu0 0.0
    %1341 = vmatprep.subr.mxu0 0.0
    %1342 = vmatpush1.msra.mxu0 0.0
    %1343 = vmatprep.subr.mxu0 0.0
    %1344 = vmatpush1.msra.mxu0 0.0
    %1345 = vmatprep.subr.mxu0 0.0
    %1346 = vmatpush1.msra.mxu0 0.0
    %1347 = vmatprep.subr.mxu0 0.0
    %1348 = vmatpush1.msra.mxu0 0.0
    %1349 = vmatprep.subr.mxu0 0.0
    %1350 = vmatpush1.msra.mxu0 0.0
    %1351 = vmatprep.subr.mxu0 0.0
    %1352 = vmatpush1.msra.mxu0 0.0
    %1353 = vmatprep.subr.mxu0 0.0
    %1354 = vmatpush1.msra.mxu0 0.0
    %1355 = vmatprep.subr.mxu0 0.0
    %1356 = vmatpush1.msra.mxu0 0.0
    %1357 = vmatprep.subr.mxu0 0.0
    %1358 = vmatpush1.msra.mxu0 0.0
    %1359 = vmatprep.subr.mxu0 0.0
    %1360 = vmatpush1.msra.mxu0 0.0
    %1361 = vmatprep.subr.mxu0 0.0
    %1362 = vmatpush1.msra.mxu0 0.0
    %1363 = vmatprep.subr.mxu0 0.0
    %1364 = vmatpush1.msra.mxu0 0.0
    %1365 = vmatprep.subr.mxu0 0.0
    %1366 = vmatpush1.msra.mxu0 0.0
    %1367 = vmatprep.subr.mxu0 0.0
    %1368 = vmatpush1.msra.mxu0 0.0
    %1369 = vmatprep.subr.mxu0 0.0
    %1370 = vmatpush1.msra.mxu0 0.0
    %1371 = vmatprep.subr.mxu0 0.0
    %1372 = vmatpush1.msra.mxu0 0.0
    %1373 = vmatprep.subr.mxu0 0.0
    %1374 = vmatpush1.msra.mxu0 0.0
    %1375 = vmatprep.subr.mxu0 0.0
    %1376 = vmatpush1.msra.mxu0 0.0
    %1377 = vmatprep.subr.mxu0 0.0
    %1378 = vmatpush1.msra.mxu0 0.0
    %1379 = vmatprep.subr.mxu0 0.0
    %1380 = vmatpush1.msra.mxu0 0.0
    %1381 = vmatprep.subr.mxu0 0.0
    %1382 = vmatpush1.msra.mxu0 0.0
    %1383 = vmatprep.subr.mxu0 0.0
    %1384 = vmatpush1.msra.mxu0 0.0
    %1385 = vmatprep.subr.mxu0 0.0
    %1386 = vmatpush1.msra.mxu0 0.0
    %1387 = vmatprep.subr.mxu0 0.0
    %1388 = vmatpush1.msra.mxu0 0.0
    %1389 = vmatprep.subr.mxu0 0.0
    %1390 = vmatpush1.msra.mxu0 0.0
    %1391 = vmatprep.subr.mxu0 0.0
    %1392 = vmatpush1.msra.mxu0 0.0
    %1393 = vmatprep.subr.mxu0 0.0
    %1394 = vmatpush1.msra.mxu0 0.0
    %1395 = vmatprep.mubr.f32.mxu0 0.0
    %1396 = vmatmul.mubr.f32.gmra.mrb[0].mxu0 %v1329
    %v1397 = vpop.f32.mrb[0].mxu0
    %v1398 = vadd.f32 0.0, %v1397
    %v1399 = vpop.f32.mrb[0].mxu0
    %1400 = vdwg.mxu0
    %v1401 = vadd.f32 %v201, %v1398
    %v1402 = vtanh.pop %v1401
    %v1403 = vld [vmem:[%s4] sm:$0xff]
    %v1404 = vld [vmem:[%s4 + $0x8] sm:$0xff]
    %v1405 = vld [vmem:[%s4 + $0x10] sm:$0xff]
    %v1406 = vld [vmem:[%s4 + $0x18] sm:$0xff]
    %v1407 = vld [vmem:[%s5] sm:$0x1]
    %v1409 = vlaneseq
    %v1410 = vshrl.u32 %v1409, 7
    %v1411 = vsub.s32 0, %v1410
    %v1412 = vrot.slane %v1407, %v1411
    %v1415 = vsel %vm202, %v1402, 0
    %1417 = vmatprep.subr.mxu0 0.0
    %1418 = vmatpush1.msra.mxu0 %v1403
    %1419 = vmatprep.subr.mxu0 0.0
    %1420 = vmatpush1.msra.mxu0 %v1404
    %1421 = vmatprep.subr.mxu0 0.0
    %1422 = vmatpush1.msra.mxu0 %v1405
    %1423 = vmatprep.subr.mxu0 0.0
    %1424 = vmatpush1.msra.mxu0 %v1406
    %1425 = vmatprep.subr.mxu0 0.0
    %1426 = vmatpush1.msra.mxu0 0.0
    %1427 = vmatprep.subr.mxu0 0.0
    %1428 = vmatpush1.msra.mxu0 0.0
    %1429 = vmatprep.subr.mxu0 0.0
    %1430 = vmatpush1.msra.mxu0 0.0
    %1431 = vmatprep.subr.mxu0 0.0
    %1432 = vmatpush1.msra.mxu0 0.0
    %1433 = vmatprep.subr.mxu0 0.0
    %1434 = vmatpush1.msra.mxu0 0.0
    %1435 = vmatprep.subr.mxu0 0.0
    %1436 = vmatpush1.msra.mxu0 0.0
    %1437 = vmatprep.subr.mxu0 0.0
    %1438 = vmatpush1.msra.mxu0 0.0
    %1439 = vmatprep.subr.mxu0 0.0
    %1440 = vmatpush1.msra.mxu0 0.0
    %1441 = vmatprep.subr.mxu0 0.0
    %1442 = vmatpush1.msra.mxu0 0.0
    %1443 = vmatprep.subr.mxu0 0.0
    %1444 = vmatpush1.msra.mxu0 0.0
    %1445 = vmatprep.subr.mxu0 0.0
    %1446 = vmatpush1.msra.mxu0 0.0
    %1447 = vmatprep.subr.mxu0 0.0
    %1448 = vmatpush1.msra.mxu0 0.0
    %1449 = vmatprep.subr.mxu0 0.0
    %1450 = vmatpush1.msra.mxu0 0.0
    %1451 = vmatprep.subr.mxu0 0.0
    %1452 = vmatpush1.msra.mxu0 0.0
    %1453 = vmatprep.subr.mxu0 0.0
    %1454 = vmatpush1.msra.mxu0 0.0
    %1455 = vmatprep.subr.mxu0 0.0
    %1456 = vmatpush1.msra.mxu0 0.0
    %1457 = vmatprep.subr.mxu0 0.0
    %1458 = vmatpush1.msra.mxu0 0.0
    %1459 = vmatprep.subr.mxu0 0.0
    %1460 = vmatpush1.msra.mxu0 0.0
    %1461 = vmatprep.subr.mxu0 0.0
    %1462 = vmatpush1.msra.mxu0 0.0
    %1463 = vmatprep.subr.mxu0 0.0
    %1464 = vmatpush1.msra.mxu0 0.0
    %1465 = vmatprep.subr.mxu0 0.0
    %1466 = vmatpush1.msra.mxu0 0.0
    %1467 = vmatprep.subr.mxu0 0.0
    %1468 = vmatpush1.msra.mxu0 0.0
    %1469 = vmatprep.subr.mxu0 0.0
    %1470 = vmatpush1.msra.mxu0 0.0
    %1471 = vmatprep.subr.mxu0 0.0
    %1472 = vmatpush1.msra.mxu0 0.0
    %1473 = vmatprep.subr.mxu0 0.0
    %1474 = vmatpush1.msra.mxu0 0.0
    %1475 = vmatprep.subr.mxu0 0.0
    %1476 = vmatpush1.msra.mxu0 0.0
    %1477 = vmatprep.subr.mxu0 0.0
    %1478 = vmatpush1.msra.mxu0 0.0
    %1479 = vmatprep.subr.mxu0 0.0
    %1480 = vmatpush1.msra.mxu0 0.0
    %1481 = vmatprep.mubr.f32.mxu0 0.0
    %1482 = vmatmul.mubr.f32.gmra.mrb[0].mxu0 %v1415
    %v1483 = vpop.f32.mrb[0].mxu0
    %v1484 = vadd.f32 %v1412, %v1483
    %v1485 = vpop.f32.mrb[0].mxu0
    %1486 = vdwg.mxu0
    %v1487 = vlaneseq
    %v1488 = vand.u32 %v1487, 127
    %vm1489 = vcmp.eq.s32.totalorder %v1488, 0
    %v1490 = vmax.f32 %v1484, 0.0
    %v1491 = vmax.f32 %v1484, -10.0
    %v1492 = vmin.f32 %v1491, 10.0
    %v1493 = vsel %vm1489, %v1490, %v1492
    %1494 = vst [vmem:[#allocation5] sm:$0xff] %v1493
    // Predicated region
    $region30: #{tpu_custom_call.1} parent=1 // pred_check
      _
    $region31: #{tpu_custom_call.1} parent=1 // pred_check_branch
      %1496 = sbr.rel (0) target = $region33
    $region32: #{tpu_custom_call.1} parent=1 // pred_region
      %s1498 = ssub.s32 128, 128
      %1499 = vsyncadd [#allocation4], %s1498
      %s1501 = sshll.u32 [#allocation5], 4
      %s1502 = int_to_ptr.vmem [resolvable:$true] %s1501
      %1504 = dma.vmem_to_hbm [thread:$0]  %s1502, 128, %s6, [#allocation4]
    $region33: #{tpu_custom_call.1} parent=1 // pred_fallthru
      _
    // Predicated region
    $region34: #{tpu_custom_call.1} parent=1 // pred_check
      _
    $region35: #{tpu_custom_call.1} parent=1 // pred_check_branch
      %1506 = sbr.rel (0) target = $region37
    $region36: #{tpu_custom_call.1} parent=1 // pred_region
      %1507 = dma.done [#allocation4], 128
    $region37: #{tpu_custom_call.1} parent=1 // pred_fallthru
      _
    %1508 = vsyncpa [#allocation3], 1
    %1509 = vsyncpa [#allocation4], 1

</llo_original>
